<compile_context>
chip_gen: v7x
topology: tpu7x:2x2x1
jax: 0.10.0
libtpu: 0.0.40
codegen_flags: <defaults>
</compile_context>

<pallas_src>
import functools

import jax
import jax.numpy as jnp
from jax.experimental import pallas as pl
from jax.experimental.pallas import tpu as pltpu


def _round_up(x, m):
    return (x + m - 1) // m * m


def _cdiv(a, b):
    return (a + b - 1) // b


# ---------------------------------------------------------------------------
# Fused kernel: one grid step = one token tile belonging to one pyramid level.
#   stem  = silu(x @ Ws + bs)                                   (T, c)
#   feat  = silu(stem @ [Wc|Wr] + [bc|br])                      (T, 2c)
#   pred  = feat @ blockdiag(Wcp, Wrp) + [bcp|brp]              (T, nc_pad+4*rm1)
#   cls   = sigmoid(pred[:, :nc])
#   DFL   : per-group max, one exp, one (4*rm1, 8) matmul, exact divide
#   bbox  = dist2bbox(dist, anchor, 'xywh') * stride
#   out   = [bbox(4) | 1 | cls(nc)] via direct sub-slice stores
# ---------------------------------------------------------------------------
def fused_detect_kernel(lvl_ref, x_ref, ws_ref, bs_ref, wcr_ref, bcr_ref,
                        wp_ref, bp_ref, dfl_ref, spread_ref, out_ref, *,
                        num_classes, nc_pad, rm1, feat_c):
    f32 = jnp.float32
    lvl = lvl_ref[pl.program_id(0)]                 # level id of this tile (SMEM)

    xa = x_ref[...]                                 # (T, C+3) = [feat|ax|ay|stride]
    stem = jax.nn.silu(
        jnp.dot(xa, ws_ref[lvl], preferred_element_type=f32) + bs_ref[lvl])
    feat = jax.nn.silu(
        jnp.dot(stem, wcr_ref[lvl], preferred_element_type=f32) + bcr_ref[lvl])
    pred = jnp.dot(feat, wp_ref[lvl], preferred_element_type=f32) + bp_ref[lvl]

    cls_out = jax.nn.sigmoid(pred[:, :num_classes])             # (T, nc)

    # --- DFL: per-group max (exact per-group softmax), one exp, one matmul ---
    reg_raw = pred[:, nc_pad:]                                  # (T, 4*rm1), aligned
    m = jnp.concatenate(
        [jnp.max(reg_raw[:, g * rm1:(g + 1) * rm1], axis=-1, keepdims=True)
         for g in range(4)], axis=-1)                           # (T, 4)
    m_full = jnp.dot(m, spread_ref[...], preferred_element_type=f32)   # (T, 4*rm1)
    e = jnp.exp(reg_raw - m_full)
    pe = jnp.dot(e, dfl_ref[...], preferred_element_type=f32)   # (T, 8) [num|den]
    dist = pe[:, 0:4] / pe[:, 4:8]                              # exact divide

    # --- dist2bbox (xywh) decode + stride scaling; direct slice stores --------
    anchor = xa[:, feat_c:feat_c + 2]                           # (T, 2)
    stride = xa[:, feat_c + 2:feat_c + 3]                       # (T, 1)
    lt = dist[:, 0:2]
    rb = dist[:, 2:4]
    out_ref[:, 0:2] = (anchor + (rb - lt) * 0.5) * stride       # cx, cy
    out_ref[:, 2:4] = (lt + rb) * stride                        # w, h
    out_ref[:, 4:5] = jnp.ones_like(stride)                     # objectness = 1
    out_ref[:, 5:] = cls_out                                    # class scores


# ---------------------------------------------------------------------------
# Wrapper: pack tokens+anchors, stack weights, single pallas_call, strip pads.
# ---------------------------------------------------------------------------
def detect_forward(xs, all_params, strides, *, reg_max, num_classes,
                   grid_cell_offset=0.5, token_tile=None):
    """Eval forward of Detect. Returns (B, sum_l, 4 + 1 + num_classes)."""
    B, C = xs[0].shape[0], xs[0].shape[1]
    nl = len(xs)
    rm1 = reg_max + 1
    c_stem = all_params[0][0].shape[1]
    nc_pad = _round_up(num_classes, 128)        # lane-align start of reg logits
    n_pred = nc_pad + 4 * rm1
    no_out = 4 + 1 + num_classes
    xin_c = C + 3                               # features | ax | ay | stride

    level_ntok = [B * x.shape[2] * x.shape[3] for x in xs]
    if token_tile is None:
        # Large tiles amortize the ~0.35us/step pipeline cost; even with
        # 128-lane padding the per-step buffers are only a few MiB.
        token_tile = min(1024, _round_up(max(level_ntok), 16))
    tile = _round_up(token_tile, 16)

    # ---- token-major [features | ax | ay | stride] blocks, per level ---------
    x_blocks, level_ids, level_offsets, feat_shapes = [], [], [], []
    off = 0
    for i, x in enumerate(xs):
        _, Ci, H, W = x.shape
        assert Ci == C, "fused kernel assumes all levels share channel count"
        feat_shapes.append((H, W))
        ntok = B * H * W
        ntiles = _cdiv(ntok, tile)
        npad = ntiles * tile

        # NCHW -> (B*H*W, C); token order b*H*W + h*W + w matches flatten(2).
        xt = jnp.transpose(x, (0, 2, 3, 1)).reshape(ntok, C)
        sx = jnp.arange(W, dtype=jnp.float32) + grid_cell_offset
        sy = jnp.arange(H, dtype=jnp.float32) + grid_cell_offset
        syy, sxx = jnp.meshgrid(sy, sx, indexing="ij")
        ap = jnp.tile(jnp.stack([sxx, syy], -1).reshape(H * W, 2), (B, 1))
        st = jnp.full((ntok, 1), float(strides[i]), jnp.float32)
        xa = jnp.concatenate([xt, ap, st], axis=-1)              # (ntok, C+3)
        x_blocks.append(jnp.pad(xa, ((0, npad - ntok), (0, 0))))

        level_ids += [i] * ntiles
        level_offsets.append(off)
        off += npad

    x_tok = jnp.concatenate(x_blocks, axis=0)          # (ntok_pad, C+3)
    n_tiles = x_tok.shape[0] // tile
    level_id = jnp.asarray(level_ids, jnp.int32)       # scalar-prefetched

    # ---- stacked, VMEM-resident weights (level axis selected in-kernel) -----
    zero3 = jnp.zeros((3, c_stem), jnp.float32)        # anchor cols contribute 0
    Ws = jnp.stack([jnp.concatenate([p[0], zero3], 0) for p in all_params])
    bS = jnp.stack([p[1] for p in all_params])                          # (nl,1,c)
    Wcr = jnp.stack([jnp.concatenate([p[2], p[4]], 1) for p in all_params])
    bcr = jnp.stack([jnp.concatenate([p[3], p[5]], 1) for p in all_params])

    def blockdiag_pred(p):
        wcp, wrp = p[6], p[8]
        wc_pad = jnp.pad(wcp, ((0, 0), (0, nc_pad - num_classes)))
        top = jnp.concatenate([wc_pad, jnp.zeros((c_stem, 4 * rm1), jnp.float32)], 1)
        bot = jnp.concatenate([jnp.zeros((c_stem, nc_pad), jnp.float32), wrp], 1)
        return jnp.concatenate([top, bot], 0)                   # (2c, n_pred)

    def pred_bias(p):
        return jnp.concatenate(
            [p[7], jnp.zeros((1, nc_pad - num_classes), jnp.float32), p[9]], 1)

    Wp = jnp.stack([blockdiag_pred(p) for p in all_params])
    bp = jnp.stack([pred_bias(p) for p in all_params])

    # DFL projection: (4*rm1, 8) = [proj blockdiag | ones blockdiag]; the ones
    # blockdiag (transposed) also spreads per-group maxes back to 4*rm1 lanes.
    proj = all_params[0][10].reshape(rm1, 1)
    eye4 = jnp.eye(4, dtype=jnp.float32)
    ones_bd = jnp.kron(eye4, jnp.ones((rm1, 1), jnp.float32))   # (4*rm1, 4)
    dfl_mat = jnp.concatenate([jnp.kron(eye4, proj), ones_bd], axis=1)
    spread_mat = ones_bd.T                                       # (4, 4*rm1)

    kernel = functools.partial(fused_detect_kernel, num_classes=num_classes,
                               nc_pad=nc_pad, rm1=rm1, feat_c=C)

    const3 = lambda *_: (0, 0, 0)   # resident weights: fetched once, never again
    const2 = lambda *_: (0, 0)

    out = pl.pallas_call(
        kernel,
        grid_spec=pltpu.PrefetchScalarGridSpec(
            num_scalar_prefetch=1,
            grid=(n_tiles,),
            in_specs=[
                pl.BlockSpec((tile, xin_c), lambda i, lvl: (i, 0)),
                pl.BlockSpec((nl, xin_c, c_stem), const3),
                pl.BlockSpec((nl, 1, c_stem), const3),
                pl.BlockSpec((nl, c_stem, 2 * c_stem), const3),
                pl.BlockSpec((nl, 1, 2 * c_stem), const3),
                pl.BlockSpec((nl, 2 * c_stem, n_pred), const3),
                pl.BlockSpec((nl, 1, n_pred), const3),
                pl.BlockSpec((4 * rm1, 8), const2),
                pl.BlockSpec((4, 4 * rm1), const2),
            ],
            out_specs=pl.BlockSpec((tile, no_out), lambda i, lvl: (i, 0)),
        ),
        out_shape=jax.ShapeDtypeStruct((x_tok.shape[0], no_out), jnp.float32),
        compiler_params=pltpu.CompilerParams(
            dimension_semantics=("parallel",),
            vmem_limit_bytes=32 * 1024 * 1024),
    )(level_id, x_tok, Ws, bS, Wcr, bcr, Wp, bp, dfl_mat, spread_mat)

    # strip per-level padding and lay out as (B, sum_l, 4+1+nc)
    pieces = []
    for i, (H, W) in enumerate(feat_shapes):
        ntok = B * H * W
        o = out[level_offsets[i]:level_offsets[i] + ntok]
        pieces.append(o.reshape(B, H * W, no_out))
    return jnp.concatenate(pieces, axis=1)


# ---------------------------------------------------------------------------
# Pure-JAX reference (mirrors the PyTorch eval branch) for correctness check.
# ---------------------------------------------------------------------------
def reference_forward(xs, all_params, strides, *, reg_max, num_classes,
                      grid_cell_offset=0.5):
    hp = jax.lax.Precision.HIGHEST
    rm1 = reg_max + 1
    cls_list, reg_list, feat_shapes = [], [], []
    for x, p in zip(xs, all_params):
        B, C, H, W = x.shape
        feat_shapes.append((H, W))
        xt = jnp.transpose(x, (0, 2, 3, 1)).reshape(B * H * W, C)
        ws, bs, wc, bc, wr, br, wcp, bcp, wrp, brp, proj = p
        stem = jax.nn.silu(jnp.dot(xt, ws, precision=hp) + bs)
        cls_feat = jax.nn.silu(jnp.dot(stem, wc, precision=hp) + bc)
        reg_feat = jax.nn.silu(jnp.dot(stem, wr, precision=hp) + br)
        cls = jax.nn.sigmoid(jnp.dot(cls_feat, wcp, precision=hp) + bcp)
        reg_raw = (jnp.dot(reg_feat, wrp, precision=hp) + brp).reshape(-1, 4, rm1)
        psm = jax.nn.softmax(reg_raw, axis=-1)
        dist = jnp.sum(psm * proj.reshape(1, 1, rm1), axis=-1)
        cls_list.append(cls.reshape(B, H * W, num_classes))
        reg_list.append(dist.reshape(B, H * W, 4))
    cls_score = jnp.concatenate(cls_list, axis=1)
    reg_dist = jnp.concatenate(reg_list, axis=1)

    anchor_points, stride_tensor = [], []
    for (h, w), s in zip(feat_shapes, strides):
        sx = jnp.arange(w, dtype=jnp.float32) + grid_cell_offset
        sy = jnp.arange(h, dtype=jnp.float32) + grid_cell_offset
        syy, sxx = jnp.meshgrid(sy, sx, indexing="ij")
        anchor_points.append(jnp.stack([sxx, syy], -1).reshape(-1, 2))
        stride_tensor.append(jnp.full((h * w, 1), float(s), jnp.float32))
    anchor_points = jnp.concatenate(anchor_points, 0)
    stride_tensor = jnp.concatenate(stride_tensor, 0)

    lt, rb = reg_dist[..., :2], reg_dist[..., 2:]
    x1y1 = anchor_points - lt
    x2y2 = anchor_points + rb
    cxy = (x1y1 + x2y2) * 0.5
    wh = x2y2 - x1y1
    bbox = jnp.concatenate([cxy, wh], -1) * stride_tensor
    B = xs[0].shape[0]
    ones = jnp.ones((B, bbox.shape[1], 1), bbox.dtype)
    return jnp.concatenate([bbox, ones, cls_score], -1)


# ---------------------------------------------------------------------------
# Deterministic parameter init (BN folded into the 1x1 convs; proj = linspace
# exactly as Detect.initialize_biases sets proj_conv).
# ---------------------------------------------------------------------------
def init_layer_params(key, c_in, c_stem, num_classes, reg_max):
    ks = jax.random.split(key, 10)

    def w(k, shape, fan_in):
        return (jax.random.normal(k, shape, jnp.float32)
                / jnp.sqrt(jnp.float32(fan_in)))

    ws = w(ks[0], (c_in, c_stem), c_in)
    bs = 0.05 * jax.random.normal(ks[1], (1, c_stem), jnp.float32)
    wc = w(ks[2], (c_stem, c_stem), c_stem)
    bc = 0.05 * jax.random.normal(ks[3], (1, c_stem), jnp.float32)
    wr = w(ks[4], (c_stem, c_stem), c_stem)
    br = 0.05 * jax.random.normal(ks[5], (1, c_stem), jnp.float32)
    wcp = w(ks[6], (c_stem, num_classes), c_stem)
    bcp = 0.05 * jax.random.normal(ks[7], (1, num_classes), jnp.float32)
    wrp = w(ks[8], (c_stem, 4 * (reg_max + 1)), c_stem)
    brp = 0.05 * jax.random.normal(ks[9], (1, 4 * (reg_max + 1)), jnp.float32)
    proj = jnp.linspace(0.0, reg_max, reg_max + 1,
                        dtype=jnp.float32).reshape(1, reg_max + 1)
    return (ws, bs, wc, bc, wr, br, wcp, bcp, wrp, brp, proj)


if __name__ == "__main__":
    key = jax.random.PRNGKey(0)

    num_classes = 16
    reg_max = 16
    num_layers = 3
    strides = [8, 16, 32]
    B = 2
    channels = [32, 32, 32]
    spatial = [8, 4, 2]           # H = W per level (image size 64)

    keys = jax.random.split(key, 2 * num_layers)
    xs = [jax.random.normal(keys[i], (B, channels[i], spatial[i], spatial[i]),
                            jnp.float32)
          for i in range(num_layers)]
    all_params = [init_layer_params(keys[num_layers + i], channels[i],
                                    channels[i], num_classes, reg_max)
                  for i in range(num_layers)]

    out = detect_forward(xs, all_params, strides,
                         reg_max=reg_max, num_classes=num_classes)
    out = jax.block_until_ready(out)

    total_l = sum(s * s for s in spatial)
    assert out.shape == (B, total_l, 4 + 1 + num_classes), out.shape
    assert bool(jnp.all(jnp.isfinite(out)))

    ref = reference_forward(xs, all_params, strides,
                            reg_max=reg_max, num_classes=num_classes)
    # objectness + class scores (post-sigmoid): tight tolerance
    assert jnp.allclose(out[..., 4:], ref[..., 4:], atol=2e-2, rtol=2e-2)
    # bbox columns: exact per-group softmax + exact divide in-kernel; only
    # matmul/EUP rounding differences remain (stride x32 amplification covered)
    assert jnp.allclose(out[..., :4], ref[..., :4], atol=1.5e-1, rtol=2e-2)

    print("KERNEL_OK")
</pallas_src>

<mosaic_0001>
module attributes {stable_mosaic.version = 11 : i64} {
  func.func @fused_detect_kernel(%arg0: i32, %arg1: memref<3xi32, #tpu.memory_space<smem>>, %arg2: memref<128x35xf32, #tpu.memory_space<vmem>>, %arg3: memref<3x35x32xf32, #tpu.memory_space<vmem>>, %arg4: memref<3x1x32xf32, #tpu.memory_space<vmem>>, %arg5: memref<3x32x64xf32, #tpu.memory_space<vmem>>, %arg6: memref<3x1x64xf32, #tpu.memory_space<vmem>>, %arg7: memref<3x64x196xf32, #tpu.memory_space<vmem>>, %arg8: memref<3x1x196xf32, #tpu.memory_space<vmem>>, %arg9: memref<68x8xf32, #tpu.memory_space<vmem>>, %arg10: memref<4x68xf32, #tpu.memory_space<vmem>>, %arg11: memref<128x21xf32, #tpu.memory_space<vmem>>) attributes {dimension_semantics = [#tpu.dimension_semantics<parallel>], iteration_bounds = array<i64: 3>, scalar_prefetch = 1 : i64, scratch_operands = 0 : i64, tpu.core_type = #tpu.core_type<tc>, window_params = [{transform_indices = @transform_0, window_bounds = array<i64: 128, 35>}, {pipeline_mode = #tpu.pipeline_mode<synchronous>, transform_indices = @transform_1, window_bounds = array<i64: 3, 35, 32>}, {pipeline_mode = #tpu.pipeline_mode<synchronous>, transform_indices = @transform_2, window_bounds = array<i64: 3, 1, 32>}, {pipeline_mode = #tpu.pipeline_mode<synchronous>, transform_indices = @transform_3, window_bounds = array<i64: 3, 32, 64>}, {pipeline_mode = #tpu.pipeline_mode<synchronous>, transform_indices = @transform_4, window_bounds = array<i64: 3, 1, 64>}, {pipeline_mode = #tpu.pipeline_mode<synchronous>, transform_indices = @transform_5, window_bounds = array<i64: 3, 64, 196>}, {pipeline_mode = #tpu.pipeline_mode<synchronous>, transform_indices = @transform_6, window_bounds = array<i64: 3, 1, 196>}, {pipeline_mode = #tpu.pipeline_mode<synchronous>, transform_indices = @transform_7, window_bounds = array<i64: 68, 8>}, {pipeline_mode = #tpu.pipeline_mode<synchronous>, transform_indices = @transform_8, window_bounds = array<i64: 4, 68>}, {transform_indices = @transform_9, window_bounds = array<i64: 128, 21>}]} {
    %0 = arith.index_cast %arg0 : i32 to index
    %1 = memref.load %arg1[%0] : memref<3xi32, #tpu.memory_space<smem>>
    %c0 = arith.constant 0 : index
    %c0_0 = arith.constant 0 : index
    %2 = vector.load %arg2[%c0, %c0_0] : memref<128x35xf32, #tpu.memory_space<vmem>>, vector<128x35xf32>
    %3 = arith.index_cast %1 : i32 to index
    %c0_1 = arith.constant 0 : index
    %c0_2 = arith.constant 0 : index
    %4 = vector.load %arg3[%3, %c0_1, %c0_2] : memref<3x35x32xf32, #tpu.memory_space<vmem>>, vector<1x35x32xf32>
    %5 = vector.shape_cast %4 : vector<1x35x32xf32> to vector<35x32xf32>
    %cst = arith.constant dense<0.000000e+00> : vector<128x32xf32>
    %6 = tpu.matmul %2, %5, %cst {dimension_numbers = #tpu.dot_dimension_numbers<[1], [0], [0], [1], [0, 0, 1, 1], [], []>} : vector<128x35xf32>, vector<35x32xf32>, vector<128x32xf32> -> vector<128x32xf32>
    %7 = arith.index_cast %1 : i32 to index
    %c0_3 = arith.constant 0 : index
    %c0_4 = arith.constant 0 : index
    %8 = vector.load %arg4[%7, %c0_3, %c0_4] : memref<3x1x32xf32, #tpu.memory_space<vmem>>, vector<1x1x32xf32>
    %9 = vector.shape_cast %8 : vector<1x1x32xf32> to vector<1x32xf32>
    %10 = vector.broadcast %9 : vector<1x32xf32> to vector<128x32xf32>
    %11 = arith.addf %6, %10 : vector<128x32xf32>
    %12 = arith.negf %11 : vector<128x32xf32>
    %13 = math.exp %12 : vector<128x32xf32>
    %cst_5 = arith.constant 1.000000e+00 : f32
    %14 = vector.broadcast %cst_5 : f32 to vector<128x32xf32>
    %15 = arith.addf %14, %13 : vector<128x32xf32>
    %16 = arith.divf %14, %15 : vector<128x32xf32>
    %17 = arith.mulf %11, %16 : vector<128x32xf32>
    %18 = arith.index_cast %1 : i32 to index
    %c0_6 = arith.constant 0 : index
    %c0_7 = arith.constant 0 : index
    %19 = vector.load %arg5[%18, %c0_6, %c0_7] : memref<3x32x64xf32, #tpu.memory_space<vmem>>, vector<1x32x64xf32>
    %20 = vector.shape_cast %19 : vector<1x32x64xf32> to vector<32x64xf32>
    %cst_8 = arith.constant dense<0.000000e+00> : vector<128x64xf32>
    %21 = tpu.matmul %17, %20, %cst_8 {dimension_numbers = #tpu.dot_dimension_numbers<[1], [0], [0], [1], [0, 0, 1, 1], [], []>} : vector<128x32xf32>, vector<32x64xf32>, vector<128x64xf32> -> vector<128x64xf32>
    %22 = arith.index_cast %1 : i32 to index
    %c0_9 = arith.constant 0 : index
    %c0_10 = arith.constant 0 : index
    %23 = vector.load %arg6[%22, %c0_9, %c0_10] : memref<3x1x64xf32, #tpu.memory_space<vmem>>, vector<1x1x64xf32>
    %24 = vector.shape_cast %23 : vector<1x1x64xf32> to vector<1x64xf32>
    %25 = vector.broadcast %24 : vector<1x64xf32> to vector<128x64xf32>
    %26 = arith.addf %21, %25 : vector<128x64xf32>
    %27 = arith.negf %26 : vector<128x64xf32>
    %28 = math.exp %27 : vector<128x64xf32>
    %cst_11 = arith.constant 1.000000e+00 : f32
    %29 = vector.broadcast %cst_11 : f32 to vector<128x64xf32>
    %30 = arith.addf %29, %28 : vector<128x64xf32>
    %31 = arith.divf %29, %30 : vector<128x64xf32>
    %32 = arith.mulf %26, %31 : vector<128x64xf32>
    %33 = arith.index_cast %1 : i32 to index
    %c0_12 = arith.constant 0 : index
    %c0_13 = arith.constant 0 : index
    %34 = vector.load %arg7[%33, %c0_12, %c0_13] : memref<3x64x196xf32, #tpu.memory_space<vmem>>, vector<1x64x196xf32>
    %35 = vector.shape_cast %34 : vector<1x64x196xf32> to vector<64x196xf32>
    %cst_14 = arith.constant dense<0.000000e+00> : vector<128x196xf32>
    %36 = tpu.matmul %32, %35, %cst_14 {dimension_numbers = #tpu.dot_dimension_numbers<[1], [0], [0], [1], [0, 0, 1, 1], [], []>} : vector<128x64xf32>, vector<64x196xf32>, vector<128x196xf32> -> vector<128x196xf32>
    %37 = arith.index_cast %1 : i32 to index
    %c0_15 = arith.constant 0 : index
    %c0_16 = arith.constant 0 : index
    %38 = vector.load %arg8[%37, %c0_15, %c0_16] : memref<3x1x196xf32, #tpu.memory_space<vmem>>, vector<1x1x196xf32>
    %39 = vector.shape_cast %38 : vector<1x1x196xf32> to vector<1x196xf32>
    %40 = vector.broadcast %39 : vector<1x196xf32> to vector<128x196xf32>
    %41 = arith.addf %36, %40 : vector<128x196xf32>
    %42 = vector.extract_strided_slice %41 {offsets = [0, 0], sizes = [128, 16], strides = [1, 1]} : vector<128x196xf32> to vector<128x16xf32>
    %43 = arith.negf %42 : vector<128x16xf32>
    %44 = math.exp %43 : vector<128x16xf32>
    %cst_17 = arith.constant 1.000000e+00 : f32
    %45 = vector.broadcast %cst_17 : f32 to vector<128x16xf32>
    %46 = arith.addf %45, %44 : vector<128x16xf32>
    %47 = arith.divf %45, %46 : vector<128x16xf32>
    %48 = vector.extract_strided_slice %41 {offsets = [0, 128], sizes = [128, 68], strides = [1, 1]} : vector<128x196xf32> to vector<128x68xf32>
    %49 = vector.extract_strided_slice %48 {offsets = [0, 0], sizes = [128, 17], strides = [1, 1]} : vector<128x68xf32> to vector<128x17xf32>
    %cst_18 = arith.constant dense<0xFF800000> : vector<128xf32>
    %50 = vector.multi_reduction <maximumf>, %49, %cst_18 [1] : vector<128x17xf32> to vector<128xf32>
    %51 = vector.shape_cast %50 : vector<128xf32> to vector<128x1xf32>
    %52 = vector.extract_strided_slice %48 {offsets = [0, 17], sizes = [128, 17], strides = [1, 1]} : vector<128x68xf32> to vector<128x17xf32>
    %cst_19 = arith.constant dense<0xFF800000> : vector<128xf32>
    %53 = vector.multi_reduction <maximumf>, %52, %cst_19 [1] : vector<128x17xf32> to vector<128xf32>
    %54 = vector.shape_cast %53 : vector<128xf32> to vector<128x1xf32>
    %55 = vector.extract_strided_slice %48 {offsets = [0, 34], sizes = [128, 17], strides = [1, 1]} : vector<128x68xf32> to vector<128x17xf32>
    %cst_20 = arith.constant dense<0xFF800000> : vector<128xf32>
    %56 = vector.multi_reduction <maximumf>, %55, %cst_20 [1] : vector<128x17xf32> to vector<128xf32>
    %57 = vector.shape_cast %56 : vector<128xf32> to vector<128x1xf32>
    %58 = vector.extract_strided_slice %48 {offsets = [0, 51], sizes = [128, 17], strides = [1, 1]} : vector<128x68xf32> to vector<128x17xf32>
    %cst_21 = arith.constant dense<0xFF800000> : vector<128xf32>
    %59 = vector.multi_reduction <maximumf>, %58, %cst_21 [1] : vector<128x17xf32> to vector<128xf32>
    %60 = vector.shape_cast %59 : vector<128xf32> to vector<128x1xf32>
    %61 = tpu.concatenate %51, %54, %57, %60 in 1 : vector<128x1xf32>, vector<128x1xf32>, vector<128x1xf32>, vector<128x1xf32> -> vector<128x4xf32>
    %c0_22 = arith.constant 0 : index
    %c0_23 = arith.constant 0 : index
    %62 = vector.load %arg10[%c0_22, %c0_23] : memref<4x68xf32, #tpu.memory_space<vmem>>, vector<4x68xf32>
    %cst_24 = arith.constant dense<0.000000e+00> : vector<128x68xf32>
    %63 = tpu.matmul %61, %62, %cst_24 {dimension_numbers = #tpu.dot_dimension_numbers<[1], [0], [0], [1], [0, 0, 1, 1], [], []>} : vector<128x4xf32>, vector<4x68xf32>, vector<128x68xf32> -> vector<128x68xf32>
    %64 = arith.subf %48, %63 : vector<128x68xf32>
    %65 = math.exp %64 : vector<128x68xf32>
    %c0_25 = arith.constant 0 : index
    %c0_26 = arith.constant 0 : index
    %66 = vector.load %arg9[%c0_25, %c0_26] : memref<68x8xf32, #tpu.memory_space<vmem>>, vector<68x8xf32>
    %cst_27 = arith.constant dense<0.000000e+00> : vector<128x8xf32>
    %67 = tpu.matmul %65, %66, %cst_27 {dimension_numbers = #tpu.dot_dimension_numbers<[1], [0], [0], [1], [0, 0, 1, 1], [], []>} : vector<128x68xf32>, vector<68x8xf32>, vector<128x8xf32> -> vector<128x8xf32>
    %68 = vector.extract_strided_slice %67 {offsets = [0, 0], sizes = [128, 4], strides = [1, 1]} : vector<128x8xf32> to vector<128x4xf32>
    %69 = vector.extract_strided_slice %67 {offsets = [0, 4], sizes = [128, 4], strides = [1, 1]} : vector<128x8xf32> to vector<128x4xf32>
    %70 = arith.divf %68, %69 : vector<128x4xf32>
    %71 = vector.extract_strided_slice %2 {offsets = [0, 32], sizes = [128, 2], strides = [1, 1]} : vector<128x35xf32> to vector<128x2xf32>
    %72 = vector.extract_strided_slice %2 {offsets = [0, 34], sizes = [128, 1], strides = [1, 1]} : vector<128x35xf32> to vector<128x1xf32>
    %73 = vector.extract_strided_slice %70 {offsets = [0, 0], sizes = [128, 2], strides = [1, 1]} : vector<128x4xf32> to vector<128x2xf32>
    %74 = vector.extract_strided_slice %70 {offsets = [0, 2], sizes = [128, 2], strides = [1, 1]} : vector<128x4xf32> to vector<128x2xf32>
    %75 = arith.subf %74, %73 : vector<128x2xf32>
    %cst_28 = arith.constant 5.000000e-01 : f32
    %76 = vector.broadcast %cst_28 : f32 to vector<128x2xf32>
    %77 = arith.mulf %75, %76 : vector<128x2xf32>
    %78 = arith.addf %71, %77 : vector<128x2xf32>
    %79 = vector.broadcast %72 : vector<128x1xf32> to vector<128x2xf32>
    %80 = arith.mulf %78, %79 : vector<128x2xf32>
    %c0_29 = arith.constant 0 : index
    %c0_30 = arith.constant 0 : index
    %81 = vector.load %arg11[%c0_29, %c0_30] : memref<128x21xf32, #tpu.memory_space<vmem>>, vector<128x2xf32>
    tpu.vector_store %arg11[%c0_29, %c0_30], %80 {strides = array<i32>} : memref<128x21xf32, #tpu.memory_space<vmem>>, vector<128x2xf32>,
    %82 = arith.addf %73, %74 : vector<128x2xf32>
    %83 = vector.broadcast %72 : vector<128x1xf32> to vector<128x2xf32>
    %84 = arith.mulf %82, %83 : vector<128x2xf32>
    %c0_31 = arith.constant 0 : index
    %c2 = arith.constant 2 : index
    %85 = vector.load %arg11[%c0_31, %c2] : memref<128x21xf32, #tpu.memory_space<vmem>>, vector<128x2xf32>
    tpu.vector_store %arg11[%c0_31, %c2], %84 {strides = array<i32>} : memref<128x21xf32, #tpu.memory_space<vmem>>, vector<128x2xf32>,
    %cst_32 = arith.constant 1.000000e+00 : f32
    %86 = vector.broadcast %cst_32 : f32 to vector<128x1xf32>
    %c0_33 = arith.constant 0 : index
    %c4 = arith.constant 4 : index
    %87 = vector.load %arg11[%c0_33, %c4] : memref<128x21xf32, #tpu.memory_space<vmem>>, vector<128x1xf32>
    tpu.vector_store %arg11[%c0_33, %c4], %86 {strides = array<i32>} : memref<128x21xf32, #tpu.memory_space<vmem>>, vector<128x1xf32>,
    %c0_34 = arith.constant 0 : index
    %c5 = arith.constant 5 : index
    %88 = vector.load %arg11[%c0_34, %c5] : memref<128x21xf32, #tpu.memory_space<vmem>>, vector<128x16xf32>
    tpu.vector_store %arg11[%c0_34, %c5], %47 {strides = array<i32>} : memref<128x21xf32, #tpu.memory_space<vmem>>, vector<128x16xf32>,
    return
  }
  func.func @transform_0(%arg0: i32, %arg1: memref<3xi32, #tpu.memory_space<smem>>) -> (i32, i32) {
    %c0_i32 = arith.constant 0 : i32
    %c0_i32_0 = arith.constant 0 : i32
    return %arg0, %c0_i32 : i32, i32
  }
  func.func @transform_1(%arg0: i32, %arg1: memref<3xi32, #tpu.memory_space<smem>>) -> (i32, i32, i32) {
    %c0_i32 = arith.constant 0 : i32
    %c0_i32_0 = arith.constant 0 : i32
    %c0_i32_1 = arith.constant 0 : i32
    %c0_i32_2 = arith.constant 0 : i32
    return %c0_i32, %c0_i32_0, %c0_i32_1 : i32, i32, i32
  }
  func.func @transform_2(%arg0: i32, %arg1: memref<3xi32, #tpu.memory_space<smem>>) -> (i32, i32, i32) {
    %c0_i32 = arith.constant 0 : i32
    %c0_i32_0 = arith.constant 0 : i32
    %c0_i32_1 = arith.constant 0 : i32
    %c0_i32_2 = arith.constant 0 : i32
    return %c0_i32, %c0_i32_0, %c0_i32_1 : i32, i32, i32
  }
  func.func @transform_3(%arg0: i32, %arg1: memref<3xi32, #tpu.memory_space<smem>>) -> (i32, i32, i32) {
    %c0_i32 = arith.constant 0 : i32
    %c0_i32_0 = arith.constant 0 : i32
    %c0_i32_1 = arith.constant 0 : i32
    %c0_i32_2 = arith.constant 0 : i32
    return %c0_i32, %c0_i32_0, %c0_i32_1 : i32, i32, i32
  }
  func.func @transform_4(%arg0: i32, %arg1: memref<3xi32, #tpu.memory_space<smem>>) -> (i32, i32, i32) {
    %c0_i32 = arith.constant 0 : i32
    %c0_i32_0 = arith.constant 0 : i32
    %c0_i32_1 = arith.constant 0 : i32
    %c0_i32_2 = arith.constant 0 : i32
    return %c0_i32, %c0_i32_0, %c0_i32_1 : i32, i32, i32
  }
  func.func @transform_5(%arg0: i32, %arg1: memref<3xi32, #tpu.memory_space<smem>>) -> (i32, i32, i32) {
    %c0_i32 = arith.constant 0 : i32
    %c0_i32_0 = arith.constant 0 : i32
    %c0_i32_1 = arith.constant 0 : i32
    %c0_i32_2 = arith.constant 0 : i32
    return %c0_i32, %c0_i32_0, %c0_i32_1 : i32, i32, i32
  }
  func.func @transform_6(%arg0: i32, %arg1: memref<3xi32, #tpu.memory_space<smem>>) -> (i32, i32, i32) {
    %c0_i32 = arith.constant 0 : i32
    %c0_i32_0 = arith.constant 0 : i32
    %c0_i32_1 = arith.constant 0 : i32
    %c0_i32_2 = arith.constant 0 : i32
    return %c0_i32, %c0_i32_0, %c0_i32_1 : i32, i32, i32
  }
  func.func @transform_7(%arg0: i32, %arg1: memref<3xi32, #tpu.memory_space<smem>>) -> (i32, i32) {
    %c0_i32 = arith.constant 0 : i32
    %c0_i32_0 = arith.constant 0 : i32
    %c0_i32_1 = arith.constant 0 : i32
    return %c0_i32, %c0_i32_0 : i32, i32
  }
  func.func @transform_8(%arg0: i32, %arg1: memref<3xi32, #tpu.memory_space<smem>>) -> (i32, i32) {
    %c0_i32 = arith.constant 0 : i32
    %c0_i32_0 = arith.constant 0 : i32
    %c0_i32_1 = arith.constant 0 : i32
    return %c0_i32, %c0_i32_0 : i32, i32
  }
  func.func @transform_9(%arg0: i32, %arg1: memref<3xi32, #tpu.memory_space<smem>>) -> (i32, i32) {
    %c0_i32 = arith.constant 0 : i32
    %c0_i32_0 = arith.constant 0 : i32
    return %arg0, %c0_i32 : i32, i32
  }
}

</mosaic_0001>

<llo_original>
// kernel: tpu_custom_call.1
$region0: #{tpu_custom_call.1}
  #allocation0 [shape = 'u32[]', space=smem, size = 0x4, offset = 0x4, fixed_abs, tag = 'smem constant byte address 0x4 - core index']
  #allocation1 [shape = 'u32[144,128]{1,0:T(1,128)}', space=vmem, size = 0x12000, scoped, tag = 'internal scratch']
  #allocation2 [shape = 's32[1]{0}', space=sflag, size = 0x4, scoped, tag = 'scoped memory for tpu_custom_call.1']
  #allocation3 [shape = 'u8[512]{0}', space=smem, size = 0x200, scoped, tag = 'prefetched SMEM operand 0']
  %s0 = inlined_call_operand.vmem [shape: s32[3], index: 0, kind: input, shape index: {}]
  %s1 = inlined_call_operand.vmem [shape: f32[384,35], index: 1, kind: input, shape index: {}]
  %s2 = inlined_call_operand.vmem [shape: f32[3,35,32], index: 2, kind: input, shape index: {}]
  %s3 = inlined_call_operand.vmem [shape: f32[3,1,32], index: 3, kind: input, shape index: {}]
  %s4 = inlined_call_operand.vmem [shape: f32[3,32,64], index: 4, kind: input, shape index: {}]
  %s5 = inlined_call_operand.vmem [shape: f32[3,1,64], index: 5, kind: input, shape index: {}]
  %s6 = inlined_call_operand.vmem [shape: f32[3,64,196], index: 6, kind: input, shape index: {}]
  %s7 = inlined_call_operand.vmem [shape: f32[3,1,196], index: 7, kind: input, shape index: {}]
  %s8 = inlined_call_operand.vmem [shape: f32[68,8], index: 8, kind: input, shape index: {}]
  %s9 = inlined_call_operand.vmem [shape: f32[4,68], index: 9, kind: input, shape index: {}]
  %s10 = inlined_call_operand.vmem [shape: f32[384,21], index: 10, kind: output, shape index: {}]
  %s11 = sld [smem:[#allocation0]]
  $region69: #{tpu_custom_call.1} parent=0
    _
  %s13 = ssub.s32 1, %s11
  %s14 = scalar_select 0, %s13, %s11
  %s15 = sshll.u32 %s0, 4
  %s16 = int_to_ptr.vmem [resolvable:$true] %s15
  %18 = dma.vmem_to_smem %s16, 16, [#allocation3], [#allocation2]
  %19 = dma.done [#allocation2], 16
  %20 = sfence
  loop: start=0, step=1, limit=5
  $region2: #{tpu_custom_call.1} parent=0 // loop_pre_header
    _
  $region3: #{tpu_custom_call.1} parent=0 // loop_header
    %s22 = sphi 0, %s26
    %p23 = scmp.ge.s32.totalorder %s22, 5
    %s32 = sphi 0, %s34
    %s35 = sphi 0, %s32
    %s36 = sphi 0, %s35
    %s52 = sphi 0, %s36
    %s56 = sphi 0, %s56
    %s58 = sphi 0, %s56
    %s59 = sphi 0, %s58
    %s73 = sphi 0, %s59
    %s77 = sphi 0, %s77
    %s79 = sphi 0, %s77
    %s80 = sphi 0, %s79
    %s94 = sphi 0, %s80
    %s98 = sphi 0, %s98
    %s100 = sphi 0, %s98
    %s101 = sphi 0, %s100
    %s115 = sphi 0, %s101
    %s119 = sphi 0, %s119
    %s121 = sphi 0, %s119
    %s122 = sphi 0, %s121
    %s136 = sphi 0, %s122
    %s140 = sphi 0, %s140
    %s142 = sphi 0, %s140
    %s143 = sphi 0, %s142
    %s157 = sphi 0, %s143
    %s161 = sphi 0, %s161
    %s163 = sphi 0, %s161
    %s164 = sphi 0, %s163
    %s178 = sphi 0, %s164
    %s182 = sphi 0, %s182
    %s184 = sphi 0, %s182
    %s185 = sphi 0, %s184
    %s199 = sphi 0, %s185
    %s203 = sphi 0, %s203
    %s205 = sphi 0, %s203
    %s206 = sphi 0, %s205
    %s220 = sphi 0, %s206
    %s226 = sphi 0, %s228
    %s229 = sphi 0, %s226
    %s230 = sphi 0, %s229
    %s246 = sphi 0, %s230
  $region4: #{tpu_custom_call.1} parent=0 // loop_header_branch
    %25 = sbr.rel (%p23) target = $region8
  $region5: #{tpu_custom_call.1} parent=0 // loop_body
    %s27 = ssub.s32 %s22, 1
    %s28 = ssub.s32 %s22, 2
    %s29 = sadd.s32 %s22, 1
    %s30 = ssub.s32 %s22, %s29
    %p31 = scmp.eq.s32.totalorder %s30, 0
    %s33 = sadd.s32 %s32, 1
    %s34 = scalar_select %p31, %s32, %s33
    %p37 = pneg %p31
    %p38 = scmp.eq.s32.totalorder %s22, 2
    %p39 = por %p37, %p38
    %p40 = scmp.ne.s32.totalorder %s32, %s35
    %p41 = scmp.eq.s32.totalorder %s22, 0
    %p42 = por %p40, %p41
    %p43 = scmp.ne.s32.totalorder %s32, %s35
    %p44 = scmp.eq.s32.totalorder %s27, 2
    %p45 = por %p43, %p44
    %p46 = scmp.ne.s32.totalorder %s35, %s36
    %p47 = scmp.eq.s32.totalorder %s27, 0
    %p48 = por %p46, %p47
    %p49 = scmp.ne.s32.totalorder %s35, %s36
    %p50 = scmp.eq.s32.totalorder %s28, 2
    %p51 = por %p49, %p50
    %p53 = scmp.ne.s32.totalorder %s36, %s52
    %p54 = scmp.eq.s32.totalorder %s28, 0
    %p55 = por %p53, %p54
    %s57 = sadd.s32 %s56, 1
    %p60 = scmp.eq.s32.totalorder %s22, 2
    %p61 = scmp.ne.s32.totalorder %s56, %s58
    %p62 = scmp.eq.s32.totalorder %s22, 0
    %p63 = por %p61, %p62
    %p64 = scmp.ne.s32.totalorder %s56, %s58
    %p65 = scmp.eq.s32.totalorder %s27, 2
    %p66 = por %p64, %p65
    %p67 = scmp.ne.s32.totalorder %s58, %s59
    %p68 = scmp.eq.s32.totalorder %s27, 0
    %p69 = por %p67, %p68
    %p70 = scmp.ne.s32.totalorder %s58, %s59
    %p71 = scmp.eq.s32.totalorder %s28, 2
    %p72 = por %p70, %p71
    %p74 = scmp.ne.s32.totalorder %s59, %s73
    %p75 = scmp.eq.s32.totalorder %s28, 0
    %p76 = por %p74, %p75
    %s78 = sadd.s32 %s77, 1
    %p81 = scmp.eq.s32.totalorder %s22, 2
    %p82 = scmp.ne.s32.totalorder %s77, %s79
    %p83 = scmp.eq.s32.totalorder %s22, 0
    %p84 = por %p82, %p83
    %p85 = scmp.ne.s32.totalorder %s77, %s79
    %p86 = scmp.eq.s32.totalorder %s27, 2
    %p87 = por %p85, %p86
    %p88 = scmp.ne.s32.totalorder %s79, %s80
    %p89 = scmp.eq.s32.totalorder %s27, 0
    %p90 = por %p88, %p89
    %p91 = scmp.ne.s32.totalorder %s79, %s80
    %p92 = scmp.eq.s32.totalorder %s28, 2
    %p93 = por %p91, %p92
    %p95 = scmp.ne.s32.totalorder %s80, %s94
    %p96 = scmp.eq.s32.totalorder %s28, 0
    %p97 = por %p95, %p96
    %s99 = sadd.s32 %s98, 1
    %p102 = scmp.eq.s32.totalorder %s22, 2
    %p103 = scmp.ne.s32.totalorder %s98, %s100
    %p104 = scmp.eq.s32.totalorder %s22, 0
    %p105 = por %p103, %p104
    %p106 = scmp.ne.s32.totalorder %s98, %s100
    %p107 = scmp.eq.s32.totalorder %s27, 2
    %p108 = por %p106, %p107
    %p109 = scmp.ne.s32.totalorder %s100, %s101
    %p110 = scmp.eq.s32.totalorder %s27, 0
    %p111 = por %p109, %p110
    %p112 = scmp.ne.s32.totalorder %s100, %s101
    %p113 = scmp.eq.s32.totalorder %s28, 2
    %p114 = por %p112, %p113
    %p116 = scmp.ne.s32.totalorder %s101, %s115
    %p117 = scmp.eq.s32.totalorder %s28, 0
    %p118 = por %p116, %p117
    %s120 = sadd.s32 %s119, 1
    %p123 = scmp.eq.s32.totalorder %s22, 2
    %p124 = scmp.ne.s32.totalorder %s119, %s121
    %p125 = scmp.eq.s32.totalorder %s22, 0
    %p126 = por %p124, %p125
    %p127 = scmp.ne.s32.totalorder %s119, %s121
    %p128 = scmp.eq.s32.totalorder %s27, 2
    %p129 = por %p127, %p128
    %p130 = scmp.ne.s32.totalorder %s121, %s122
    %p131 = scmp.eq.s32.totalorder %s27, 0
    %p132 = por %p130, %p131
    %p133 = scmp.ne.s32.totalorder %s121, %s122
    %p134 = scmp.eq.s32.totalorder %s28, 2
    %p135 = por %p133, %p134
    %p137 = scmp.ne.s32.totalorder %s122, %s136
    %p138 = scmp.eq.s32.totalorder %s28, 0
    %p139 = por %p137, %p138
    %s141 = sadd.s32 %s140, 1
    %p144 = scmp.eq.s32.totalorder %s22, 2
    %p145 = scmp.ne.s32.totalorder %s140, %s142
    %p146 = scmp.eq.s32.totalorder %s22, 0
    %p147 = por %p145, %p146
    %p148 = scmp.ne.s32.totalorder %s140, %s142
    %p149 = scmp.eq.s32.totalorder %s27, 2
    %p150 = por %p148, %p149
    %p151 = scmp.ne.s32.totalorder %s142, %s143
    %p152 = scmp.eq.s32.totalorder %s27, 0
    %p153 = por %p151, %p152
    %p154 = scmp.ne.s32.totalorder %s142, %s143
    %p155 = scmp.eq.s32.totalorder %s28, 2
    %p156 = por %p154, %p155
    %p158 = scmp.ne.s32.totalorder %s143, %s157
    %p159 = scmp.eq.s32.totalorder %s28, 0
    %p160 = por %p158, %p159
    %s162 = sadd.s32 %s161, 1
    %p165 = scmp.eq.s32.totalorder %s22, 2
    %p166 = scmp.ne.s32.totalorder %s161, %s163
    %p167 = scmp.eq.s32.totalorder %s22, 0
    %p168 = por %p166, %p167
    %p169 = scmp.ne.s32.totalorder %s161, %s163
    %p170 = scmp.eq.s32.totalorder %s27, 2
    %p171 = por %p169, %p170
    %p172 = scmp.ne.s32.totalorder %s163, %s164
    %p173 = scmp.eq.s32.totalorder %s27, 0
    %p174 = por %p172, %p173
    %p175 = scmp.ne.s32.totalorder %s163, %s164
    %p176 = scmp.eq.s32.totalorder %s28, 2
    %p177 = por %p175, %p176
    %p179 = scmp.ne.s32.totalorder %s164, %s178
    %p180 = scmp.eq.s32.totalorder %s28, 0
    %p181 = por %p179, %p180
    %s183 = sadd.s32 %s182, 1
    %p186 = scmp.eq.s32.totalorder %s22, 2
    %p187 = scmp.ne.s32.totalorder %s182, %s184
    %p188 = scmp.eq.s32.totalorder %s22, 0
    %p189 = por %p187, %p188
    %p190 = scmp.ne.s32.totalorder %s182, %s184
    %p191 = scmp.eq.s32.totalorder %s27, 2
    %p192 = por %p190, %p191
    %p193 = scmp.ne.s32.totalorder %s184, %s185
    %p194 = scmp.eq.s32.totalorder %s27, 0
    %p195 = por %p193, %p194
    %p196 = scmp.ne.s32.totalorder %s184, %s185
    %p197 = scmp.eq.s32.totalorder %s28, 2
    %p198 = por %p196, %p197
    %p200 = scmp.ne.s32.totalorder %s185, %s199
    %p201 = scmp.eq.s32.totalorder %s28, 0
    %p202 = por %p200, %p201
    %s204 = sadd.s32 %s203, 1
    %p207 = scmp.eq.s32.totalorder %s22, 2
    %p208 = scmp.ne.s32.totalorder %s203, %s205
    %p209 = scmp.eq.s32.totalorder %s22, 0
    %p210 = por %p208, %p209
    %p211 = scmp.ne.s32.totalorder %s203, %s205
    %p212 = scmp.eq.s32.totalorder %s27, 2
    %p213 = por %p211, %p212
    %p214 = scmp.ne.s32.totalorder %s205, %s206
    %p215 = scmp.eq.s32.totalorder %s27, 0
    %p216 = por %p214, %p215
    %p217 = scmp.ne.s32.totalorder %s205, %s206
    %p218 = scmp.eq.s32.totalorder %s28, 2
    %p219 = por %p217, %p218
    %p221 = scmp.ne.s32.totalorder %s206, %s220
    %p222 = scmp.eq.s32.totalorder %s28, 0
    %p223 = por %p221, %p222
    %s224 = ssub.s32 %s22, %s29
    %p225 = scmp.eq.s32.totalorder %s224, 0
    %s227 = sadd.s32 %s226, 1
    %s228 = scalar_select %p225, %s226, %s227
    %p231 = pneg %p225
    %p232 = scmp.eq.s32.totalorder %s22, 2
    %p233 = por %p231, %p232
    %p234 = scmp.ne.s32.totalorder %s226, %s229
    %p235 = scmp.eq.s32.totalorder %s22, 0
    %p236 = por %p234, %p235
    %p237 = scmp.ne.s32.totalorder %s226, %s229
    %p238 = scmp.eq.s32.totalorder %s27, 2
    %p239 = por %p237, %p238
    %p240 = scmp.ne.s32.totalorder %s229, %s230
    %p241 = scmp.eq.s32.totalorder %s27, 0
    %p242 = por %p240, %p241
    %p243 = scmp.ne.s32.totalorder %s229, %s230
    %p244 = scmp.eq.s32.totalorder %s28, 2
    %p245 = por %p243, %p244
    %p247 = scmp.ne.s32.totalorder %s230, %s246
    %p248 = scmp.eq.s32.totalorder %s28, 0
    %p249 = por %p247, %p248
    %p250 = scmp.le.s32.totalorder 1, %s22
    %p251 = scmp.lt.s32.totalorder %s22, 4
    %p252 = pnand %p250, %p251
    %p253 = pneg %p252
    // Predicated region
    $region9: #{tpu_custom_call.1} parent=5 // pred_check
      _
    $region10: #{tpu_custom_call.1} parent=5 // pred_check_branch
      %255 = sbr.rel (%p252) target = $region12
    $region11: #{tpu_custom_call.1} parent=5 // pred_region
      %s256 = ssub.s32 %s22, 1
      // Predicated region
      $region13: #{tpu_custom_call.1} parent=11 // pred_check
        %p257 = pneg %p69
      $region14: #{tpu_custom_call.1} parent=11 // pred_check_branch
        %259 = sbr.rel (%p257) target = $region16
      $region15: #{tpu_custom_call.1} parent=11 // pred_region
        _
      $region16: #{tpu_custom_call.1} parent=11 // pred_fallthru
        _
      // Predicated region
      $region17: #{tpu_custom_call.1} parent=11 // pred_check
        %p260 = pneg %p90
      $region18: #{tpu_custom_call.1} parent=11 // pred_check_branch
        %262 = sbr.rel (%p260) target = $region20
      $region19: #{tpu_custom_call.1} parent=11 // pred_region
        _
      $region20: #{tpu_custom_call.1} parent=11 // pred_fallthru
        _
      // Predicated region
      $region21: #{tpu_custom_call.1} parent=11 // pred_check
        %p263 = pneg %p111
      $region22: #{tpu_custom_call.1} parent=11 // pred_check_branch
        %265 = sbr.rel (%p263) target = $region24
      $region23: #{tpu_custom_call.1} parent=11 // pred_region
        _
      $region24: #{tpu_custom_call.1} parent=11 // pred_fallthru
        _
      // Predicated region
      $region25: #{tpu_custom_call.1} parent=11 // pred_check
        %p266 = pneg %p132
      $region26: #{tpu_custom_call.1} parent=11 // pred_check_branch
        %268 = sbr.rel (%p266) target = $region28
      $region27: #{tpu_custom_call.1} parent=11 // pred_region
        _
      $region28: #{tpu_custom_call.1} parent=11 // pred_fallthru
        _
      // Predicated region
      $region29: #{tpu_custom_call.1} parent=11 // pred_check
        %p269 = pneg %p153
      $region30: #{tpu_custom_call.1} parent=11 // pred_check_branch
        %271 = sbr.rel (%p269) target = $region32
      $region31: #{tpu_custom_call.1} parent=11 // pred_region
        _
      $region32: #{tpu_custom_call.1} parent=11 // pred_fallthru
        _
      // Predicated region
      $region33: #{tpu_custom_call.1} parent=11 // pred_check
        %p272 = pneg %p174
      $region34: #{tpu_custom_call.1} parent=11 // pred_check_branch
        %274 = sbr.rel (%p272) target = $region36
      $region35: #{tpu_custom_call.1} parent=11 // pred_region
        _
      $region36: #{tpu_custom_call.1} parent=11 // pred_fallthru
        _
      // Predicated region
      $region37: #{tpu_custom_call.1} parent=11 // pred_check
        %p275 = pneg %p195
      $region38: #{tpu_custom_call.1} parent=11 // pred_check_branch
        %277 = sbr.rel (%p275) target = $region40
      $region39: #{tpu_custom_call.1} parent=11 // pred_region
        _
      $region40: #{tpu_custom_call.1} parent=11 // pred_fallthru
        _
      // Predicated region
      $region41: #{tpu_custom_call.1} parent=11 // pred_check
        %p278 = pneg %p216
      $region42: #{tpu_custom_call.1} parent=11 // pred_check_branch
        %280 = sbr.rel (%p278) target = $region44
      $region43: #{tpu_custom_call.1} parent=11 // pred_region
        _
      $region44: #{tpu_custom_call.1} parent=11 // pred_fallthru
        _
    $region12: #{tpu_custom_call.1} parent=5 // pred_fallthru
      _
    %p281 = scmp.lt.s32.totalorder %s22, 3
    // Predicated region
    $region45: #{tpu_custom_call.1} parent=5 // pred_check
      %p282 = pneg %p281
    $region46: #{tpu_custom_call.1} parent=5 // pred_check_branch
      %284 = sbr.rel (%p282) target = $region48
    $region47: #{tpu_custom_call.1} parent=5 // pred_region
      // Predicated region
      $region49: #{tpu_custom_call.1} parent=47 // pred_check
        %p285 = pneg %p42
      $region50: #{tpu_custom_call.1} parent=47 // pred_check_branch
        %287 = sbr.rel (%p285) target = $region52
      $region51: #{tpu_custom_call.1} parent=47 // pred_region
        %s288 = smul.u32 16, %s22
        %p289 = scmp.lt.s32.totalorder %s288, 47
        %s290 = scalar_select %p289, %s288, 47
        %s291 = smul.addr %s290, 8
        %s292 = scalar_lea.vmem %s1, %s291
        %s293 = smul.u32 16, %s22
      $region52: #{tpu_custom_call.1} parent=47 // pred_fallthru
        _
    $region48: #{tpu_custom_call.1} parent=5 // pred_fallthru
      _
    %p294 = scmp.le.s32.totalorder 1, %s22
    %p295 = scmp.lt.s32.totalorder %s22, 4
    %p296 = pnand %p294, %p295
    %p297 = pneg %p296
    // Predicated region
    $region53: #{tpu_custom_call.1} parent=5 // pred_check
      _
    $region54: #{tpu_custom_call.1} parent=5 // pred_check_branch
      %299 = sbr.rel (%p296) target = $region56
    $region55: #{tpu_custom_call.1} parent=5 // pred_region
      %s300 = ssub.s32 %s22, 1
      %s301 = smul.u32 16, %s27
      %p302 = scmp.lt.s32.totalorder %s301, 47
      %s303 = scalar_select %p302, %s301, 47
      %s304 = smul.addr %s303, 8
      %s305 = scalar_lea.vmem %s1, %s304
      %p306 = pneg %p48
      %p307 = pneg %p45
      %p308 = pneg %p69
      %p309 = pneg %p66
      %p310 = pneg %p90
      %p311 = pneg %p87
      %p312 = pneg %p111
      %p313 = pneg %p108
      %p314 = pneg %p132
      %p315 = pneg %p129
      %p316 = pneg %p153
      %p317 = pneg %p150
      %p318 = pneg %p174
      %p319 = pneg %p171
      %p320 = pneg %p195
      %p321 = pneg %p192
      %p322 = pneg %p216
      %p323 = pneg %p213
      %p324 = pneg %p242
      %p325 = pneg %p239
      %s326 = smul.u32 16, %s27
      %p327 = scmp.lt.s32.totalorder %s326, 47
      %s328 = scalar_select %p327, %s326, 47
      %s329 = smul.addr %s328, 8
      %s330 = scalar_lea.vmem %s10, %s329
      %s331 = smul.u32 16, %s27
      %p332 = scmp.lt.s32.totalorder %s331, 47
      %s333 = scalar_select %p332, %s331, 47
      %s334 = smul.addr %s333, 8
      %s335 = scalar_lea.vmem %s1, %s334
      %s336 = smul.u32 16, %s27
      %s337 = smul.u32 16, %s27
      %p338 = scmp.lt.s32.totalorder %s337, 47
      %s339 = scalar_select %p338, %s337, 47
      %s340 = smul.addr %s339, 8
      %s341 = scalar_lea.vmem %s10, %s340
      %s342 = smul.u32 16, %s27
      %s343 = sld [smem:[#allocation3 + %s27]]
      %v344 = vld [vmem:[%s335] sm:$0xff]
      %v345 = vld [vmem:[%s335 + $0x8] sm:$0xff]
      %v346 = vld [vmem:[%s335 + $0x10] sm:$0xff]
      %v347 = vld [vmem:[%s335 + $0x18] sm:$0xff]
      %v348 = vld [vmem:[%s335 + $0x20] sm:$0xff]
      %v349 = vld [vmem:[%s335 + $0x28] sm:$0xff]
      %v350 = vld [vmem:[%s335 + $0x30] sm:$0xff]
      %v351 = vld [vmem:[%s335 + $0x38] sm:$0xff]
      %v352 = vld [vmem:[%s335 + $0x40] sm:$0xff]
      %v353 = vld [vmem:[%s335 + $0x48] sm:$0xff]
      %v354 = vld [vmem:[%s335 + $0x50] sm:$0xff]
      %v355 = vld [vmem:[%s335 + $0x58] sm:$0xff]
      %v356 = vld [vmem:[%s335 + $0x60] sm:$0xff]
      %v357 = vld [vmem:[%s335 + $0x68] sm:$0xff]
      %v358 = vld [vmem:[%s335 + $0x70] sm:$0xff]
      %v359 = vld [vmem:[%s335 + $0x78] sm:$0xff]
      %s360 = smul.u32 %s343, 40
      %s361 = scalar_lea.vmem %s2, %s360
      %v362 = vld [vmem:[%s361] sm:$0xff]
      %v363 = vld [vmem:[%s361 + $0x8] sm:$0xff]
      %v364 = vld [vmem:[%s361 + $0x10] sm:$0xff]
      %v365 = vld [vmem:[%s361 + $0x18] sm:$0xff]
      %v366 = vld [vmem:[%s361 + $0x20] sm:$0x7]
      %s367 = scalar_lea.vmem %s3, %s343
      %v368 = vld [vmem:[%s367] sm:$0x1]
      %v370 = vlaneseq
      %v371 = vshrl.u32 %v370, 7
      %v372 = vsub.s32 0, %v371
      %v373 = vrot.slane %v368, %v372
      %vm375 = vcmask 285696
      %v377 = vsel %vm375, %v344, 0
      %v380 = vsel %vm375, %v345, 0
      %v383 = vsel %vm375, %v346, 0
      %v386 = vsel %vm375, %v347, 0
      %v389 = vsel %vm375, %v348, 0
      %v392 = vsel %vm375, %v349, 0
      %v395 = vsel %vm375, %v350, 0
      %v398 = vsel %vm375, %v351, 0
      %v401 = vsel %vm375, %v352, 0
      %v404 = vsel %vm375, %v353, 0
      %v407 = vsel %vm375, %v354, 0
      %v410 = vsel %vm375, %v355, 0
      %v413 = vsel %vm375, %v356, 0
      %v416 = vsel %vm375, %v357, 0
      %v419 = vsel %vm375, %v358, 0
      %v422 = vsel %vm375, %v359, 0
      %vm424 = vcmask 1042432
      %v426 = vsel %vm424, %v366, 0
      %428 = vmatprep.subr.mxu0 0.0
      %429 = vmatpush1.msra.mxu0 %v362
      %430 = vmatprep.subr.mxu0 0.0
      %431 = vmatpush1.msra.mxu0 %v363
      %432 = vmatprep.subr.mxu0 0.0
      %433 = vmatpush1.msra.mxu0 %v364
      %434 = vmatprep.subr.mxu0 0.0
      %435 = vmatpush1.msra.mxu0 %v365
      %436 = vmatprep.subr.mxu0 0.0
      %437 = vmatpush1.msra.mxu0 %v426
      %438 = vmatprep.subr.mxu0 0.0
      %439 = vmatpush1.msra.mxu0 0.0
      %440 = vmatprep.subr.mxu0 0.0
      %441 = vmatpush1.msra.mxu0 0.0
      %442 = vmatprep.subr.mxu0 0.0
      %443 = vmatpush1.msra.mxu0 0.0
      %444 = vmatprep.subr.mxu0 0.0
      %445 = vmatpush1.msra.mxu0 0.0
      %446 = vmatprep.subr.mxu0 0.0
      %447 = vmatpush1.msra.mxu0 0.0
      %448 = vmatprep.subr.mxu0 0.0
      %449 = vmatpush1.msra.mxu0 0.0
      %450 = vmatprep.subr.mxu0 0.0
      %451 = vmatpush1.msra.mxu0 0.0
      %452 = vmatprep.subr.mxu0 0.0
      %453 = vmatpush1.msra.mxu0 0.0
      %454 = vmatprep.subr.mxu0 0.0
      %455 = vmatpush1.msra.mxu0 0.0
      %456 = vmatprep.subr.mxu0 0.0
      %457 = vmatpush1.msra.mxu0 0.0
      %458 = vmatprep.subr.mxu0 0.0
      %459 = vmatpush1.msra.mxu0 0.0
      %460 = vmatprep.subr.mxu0 0.0
      %461 = vmatpush1.msra.mxu0 0.0
      %462 = vmatprep.subr.mxu0 0.0
      %463 = vmatpush1.msra.mxu0 0.0
      %464 = vmatprep.subr.mxu0 0.0
      %465 = vmatpush1.msra.mxu0 0.0
      %466 = vmatprep.subr.mxu0 0.0
      %467 = vmatpush1.msra.mxu0 0.0
      %468 = vmatprep.subr.mxu0 0.0
      %469 = vmatpush1.msra.mxu0 0.0
      %470 = vmatprep.subr.mxu0 0.0
      %471 = vmatpush1.msra.mxu0 0.0
      %472 = vmatprep.subr.mxu0 0.0
      %473 = vmatpush1.msra.mxu0 0.0
      %474 = vmatprep.subr.mxu0 0.0
      %475 = vmatpush1.msra.mxu0 0.0
      %476 = vmatprep.subr.mxu0 0.0
      %477 = vmatpush1.msra.mxu0 0.0
      %478 = vmatprep.subr.mxu0 0.0
      %479 = vmatpush1.msra.mxu0 0.0
      %480 = vmatprep.subr.mxu0 0.0
      %481 = vmatpush1.msra.mxu0 0.0
      %482 = vmatprep.subr.mxu0 0.0
      %483 = vmatpush1.msra.mxu0 0.0
      %484 = vmatprep.subr.mxu0 0.0
      %485 = vmatpush1.msra.mxu0 0.0
      %486 = vmatprep.subr.mxu0 0.0
      %487 = vmatpush1.msra.mxu0 0.0
      %488 = vmatprep.subr.mxu0 0.0
      %489 = vmatpush1.msra.mxu0 0.0
      %490 = vmatprep.subr.mxu0 0.0
      %491 = vmatpush1.msra.mxu0 0.0
      %492 = vmatprep.mubr.f32.mxu0 0.0
      %493 = vmatmul.mubr.f32.gmra.mrb[0].mxu0 %v377
      %v494 = vpop.f32.mrb[0].mxu0
      %v495 = vadd.f32 %v373, %v494
      %v496 = vpop.f32.mrb[0].mxu0
      %497 = vmatprep.mubr.f32.mxu0 0.0
      %498 = vmatmul.mubr.f32.gmra.mrb[0].mxu0 %v380
      %v499 = vpop.f32.mrb[0].mxu0
      %v500 = vadd.f32 %v373, %v499
      %v501 = vpop.f32.mrb[0].mxu0
      %502 = vmatprep.mubr.f32.mxu0 0.0
      %503 = vmatmul.mubr.f32.gmra.mrb[0].mxu0 %v383
      %v504 = vpop.f32.mrb[0].mxu0
      %v505 = vadd.f32 %v373, %v504
      %v506 = vpop.f32.mrb[0].mxu0
      %507 = vmatprep.mubr.f32.mxu0 0.0
      %508 = vmatmul.mubr.f32.gmra.mrb[0].mxu0 %v386
      %v509 = vpop.f32.mrb[0].mxu0
      %v510 = vadd.f32 %v373, %v509
      %v511 = vpop.f32.mrb[0].mxu0
      %512 = vmatprep.mubr.f32.mxu0 0.0
      %513 = vmatmul.mubr.f32.gmra.mrb[0].mxu0 %v389
      %v514 = vpop.f32.mrb[0].mxu0
      %v515 = vadd.f32 %v373, %v514
      %v516 = vpop.f32.mrb[0].mxu0
      %517 = vmatprep.mubr.f32.mxu0 0.0
      %518 = vmatmul.mubr.f32.gmra.mrb[0].mxu0 %v392
      %v519 = vpop.f32.mrb[0].mxu0
      %v520 = vadd.f32 %v373, %v519
      %v521 = vpop.f32.mrb[0].mxu0
      %522 = vmatprep.mubr.f32.mxu0 0.0
      %523 = vmatmul.mubr.f32.gmra.mrb[0].mxu0 %v395
      %v524 = vpop.f32.mrb[0].mxu0
      %v525 = vadd.f32 %v373, %v524
      %v526 = vpop.f32.mrb[0].mxu0
      %527 = vmatprep.mubr.f32.mxu0 0.0
      %528 = vmatmul.mubr.f32.gmra.mrb[0].mxu0 %v398
      %v529 = vpop.f32.mrb[0].mxu0
      %v530 = vadd.f32 %v373, %v529
      %v531 = vpop.f32.mrb[0].mxu0
      %532 = vmatprep.mubr.f32.mxu0 0.0
      %533 = vmatmul.mubr.f32.gmra.mrb[0].mxu0 %v401
      %v534 = vpop.f32.mrb[0].mxu0
      %v535 = vadd.f32 %v373, %v534
      %v536 = vpop.f32.mrb[0].mxu0
      %537 = vmatprep.mubr.f32.mxu0 0.0
      %538 = vmatmul.mubr.f32.gmra.mrb[0].mxu0 %v404
      %v539 = vpop.f32.mrb[0].mxu0
      %v540 = vadd.f32 %v373, %v539
      %v541 = vpop.f32.mrb[0].mxu0
      %542 = vmatprep.mubr.f32.mxu0 0.0
      %543 = vmatmul.mubr.f32.gmra.mrb[0].mxu0 %v407
      %v544 = vpop.f32.mrb[0].mxu0
      %v545 = vadd.f32 %v373, %v544
      %v546 = vpop.f32.mrb[0].mxu0
      %547 = vmatprep.mubr.f32.mxu0 0.0
      %548 = vmatmul.mubr.f32.gmra.mrb[0].mxu0 %v410
      %v549 = vpop.f32.mrb[0].mxu0
      %v550 = vadd.f32 %v373, %v549
      %v551 = vpop.f32.mrb[0].mxu0
      %552 = vmatprep.mubr.f32.mxu0 0.0
      %553 = vmatmul.mubr.f32.gmra.mrb[0].mxu0 %v413
      %v554 = vpop.f32.mrb[0].mxu0
      %v555 = vadd.f32 %v373, %v554
      %v556 = vpop.f32.mrb[0].mxu0
      %557 = vmatprep.mubr.f32.mxu0 0.0
      %558 = vmatmul.mubr.f32.gmra.mrb[0].mxu0 %v416
      %v559 = vpop.f32.mrb[0].mxu0
      %v560 = vadd.f32 %v373, %v559
      %v561 = vpop.f32.mrb[0].mxu0
      %562 = vmatprep.mubr.f32.mxu0 0.0
      %563 = vmatmul.mubr.f32.gmra.mrb[0].mxu0 %v419
      %v564 = vpop.f32.mrb[0].mxu0
      %v565 = vadd.f32 %v373, %v564
      %v566 = vpop.f32.mrb[0].mxu0
      %567 = vmatprep.mubr.f32.mxu0 0.0
      %568 = vmatmul.mubr.f32.gmra.mrb[0].mxu0 %v422
      %v569 = vpop.f32.mrb[0].mxu0
      %v570 = vadd.f32 %v373, %v569
      %v571 = vpop.f32.mrb[0].mxu0
      %572 = vdwg.mxu0
      %v573 = vxor.u32 %v495, 2147483648
      %v574 = vxor.u32 %v500, 2147483648
      %v575 = vxor.u32 %v505, 2147483648
      %v576 = vxor.u32 %v510, 2147483648
      %v577 = vxor.u32 %v515, 2147483648
      %v578 = vxor.u32 %v520, 2147483648
      %v579 = vxor.u32 %v525, 2147483648
      %v580 = vxor.u32 %v530, 2147483648
      %v581 = vxor.u32 %v535, 2147483648
      %v582 = vxor.u32 %v540, 2147483648
      %v583 = vxor.u32 %v545, 2147483648
      %v584 = vxor.u32 %v550, 2147483648
      %v585 = vxor.u32 %v555, 2147483648
      %v586 = vxor.u32 %v560, 2147483648
      %v587 = vxor.u32 %v565, 2147483648
      %v588 = vxor.u32 %v570, 2147483648
      %v589 = vmul.f32 %v573, 1.442695
      %v590 = vpow.pop %v589
      %v591 = vmul.f32 %v574, 1.442695
      %v592 = vpow.pop %v591
      %v593 = vmul.f32 %v575, 1.442695
      %v594 = vpow.pop %v593
      %v595 = vmul.f32 %v576, 1.442695
      %v596 = vpow.pop %v595
      %v597 = vmul.f32 %v577, 1.442695
      %v598 = vpow.pop %v597
      %v599 = vmul.f32 %v578, 1.442695
      %v600 = vpow.pop %v599
      %v601 = vmul.f32 %v579, 1.442695
      %v602 = vpow.pop %v601
      %v603 = vmul.f32 %v580, 1.442695
      %v604 = vpow.pop %v603
      %v605 = vmul.f32 %v581, 1.442695
      %v606 = vpow.pop %v605
      %v607 = vmul.f32 %v582, 1.442695
      %v608 = vpow.pop %v607
      %v609 = vmul.f32 %v583, 1.442695
      %v610 = vpow.pop %v609
      %v611 = vmul.f32 %v584, 1.442695
      %v612 = vpow.pop %v611
      %v613 = vmul.f32 %v585, 1.442695
      %v614 = vpow.pop %v613
      %v615 = vmul.f32 %v586, 1.442695
      %v616 = vpow.pop %v615
      %v617 = vmul.f32 %v587, 1.442695
      %v618 = vpow.pop %v617
      %v619 = vmul.f32 %v588, 1.442695
      %v620 = vpow.pop %v619
      %v621 = vadd.f32 %v590, 1.0
      %v622 = vadd.f32 %v592, 1.0
      %v623 = vadd.f32 %v594, 1.0
      %v624 = vadd.f32 %v596, 1.0
      %v625 = vadd.f32 %v598, 1.0
      %v626 = vadd.f32 %v600, 1.0
      %v627 = vadd.f32 %v602, 1.0
      %v628 = vadd.f32 %v604, 1.0
      %v629 = vadd.f32 %v606, 1.0
      %v630 = vadd.f32 %v608, 1.0
      %v631 = vadd.f32 %v610, 1.0
      %v632 = vadd.f32 %v612, 1.0
      %v633 = vadd.f32 %v614, 1.0
      %v634 = vadd.f32 %v616, 1.0
      %v635 = vadd.f32 %v618, 1.0
      %v636 = vadd.f32 %v620, 1.0
      %v637 = vrcp.pop %v621
      %v638 = vmul.f32 1.0, %v637
      %v639 = vrcp.pop %v622
      %v640 = vmul.f32 1.0, %v639
      %v641 = vrcp.pop %v623
      %v642 = vmul.f32 1.0, %v641
      %v643 = vrcp.pop %v624
      %v644 = vmul.f32 1.0, %v643
      %v645 = vrcp.pop %v625
      %v646 = vmul.f32 1.0, %v645
      %v647 = vrcp.pop %v626
      %v648 = vmul.f32 1.0, %v647
      %v649 = vrcp.pop %v627
      %v650 = vmul.f32 1.0, %v649
      %v651 = vrcp.pop %v628
      %v652 = vmul.f32 1.0, %v651
      %v653 = vrcp.pop %v629
      %v654 = vmul.f32 1.0, %v653
      %v655 = vrcp.pop %v630
      %v656 = vmul.f32 1.0, %v655
      %v657 = vrcp.pop %v631
      %v658 = vmul.f32 1.0, %v657
      %v659 = vrcp.pop %v632
      %v660 = vmul.f32 1.0, %v659
      %v661 = vrcp.pop %v633
      %v662 = vmul.f32 1.0, %v661
      %v663 = vrcp.pop %v634
      %v664 = vmul.f32 1.0, %v663
      %v665 = vrcp.pop %v635
      %v666 = vmul.f32 1.0, %v665
      %v667 = vrcp.pop %v636
      %v668 = vmul.f32 1.0, %v667
      %v669 = vmul.f32 %v495, %v638
      %v670 = vmul.f32 %v500, %v640
      %v671 = vmul.f32 %v505, %v642
      %v672 = vmul.f32 %v510, %v644
      %v673 = vmul.f32 %v515, %v646
      %v674 = vmul.f32 %v520, %v648
      %v675 = vmul.f32 %v525, %v650
      %v676 = vmul.f32 %v530, %v652
      %v677 = vmul.f32 %v535, %v654
      %v678 = vmul.f32 %v540, %v656
      %v679 = vmul.f32 %v545, %v658
      %v680 = vmul.f32 %v550, %v660
      %v681 = vmul.f32 %v555, %v662
      %v682 = vmul.f32 %v560, %v664
      %v683 = vmul.f32 %v565, %v666
      %v684 = vmul.f32 %v570, %v668
      %s685 = smul.u32 %s343, 32
      %s686 = scalar_lea.vmem %s4, %s685
      %v687 = vld [vmem:[%s686] sm:$0xff]
      %v688 = vld [vmem:[%s686 + $0x8] sm:$0xff]
      %v689 = vld [vmem:[%s686 + $0x10] sm:$0xff]
      %v690 = vld [vmem:[%s686 + $0x18] sm:$0xff]
      %s691 = scalar_lea.vmem %s5, %s343
      %v692 = vld [vmem:[%s691] sm:$0x1]
      %v694 = vlaneseq
      %v695 = vshrl.u32 %v694, 7
      %v696 = vsub.s32 0, %v695
      %v697 = vrot.slane %v692, %v696
      %vm699 = vcmask 261120
      %v701 = vsel %vm699, %v669, 0
      %v704 = vsel %vm699, %v670, 0
      %v707 = vsel %vm699, %v671, 0
      %v710 = vsel %vm699, %v672, 0
      %v713 = vsel %vm699, %v673, 0
      %v716 = vsel %vm699, %v674, 0
      %v719 = vsel %vm699, %v675, 0
      %v722 = vsel %vm699, %v676, 0
      %v725 = vsel %vm699, %v677, 0
      %v728 = vsel %vm699, %v678, 0
      %v731 = vsel %vm699, %v679, 0
      %v734 = vsel %vm699, %v680, 0
      %v737 = vsel %vm699, %v681, 0
      %v740 = vsel %vm699, %v682, 0
      %v743 = vsel %vm699, %v683, 0
      %v746 = vsel %vm699, %v684, 0
      %748 = vmatprep.subr.mxu0 0.0
      %749 = vmatpush1.msra.mxu0 %v687
      %750 = vmatprep.subr.mxu0 0.0
      %751 = vmatpush1.msra.mxu0 %v688
      %752 = vmatprep.subr.mxu0 0.0
      %753 = vmatpush1.msra.mxu0 %v689
      %754 = vmatprep.subr.mxu0 0.0
      %755 = vmatpush1.msra.mxu0 %v690
      %756 = vmatprep.subr.mxu0 0.0
      %757 = vmatpush1.msra.mxu0 0.0
      %758 = vmatprep.subr.mxu0 0.0
      %759 = vmatpush1.msra.mxu0 0.0
      %760 = vmatprep.subr.mxu0 0.0
      %761 = vmatpush1.msra.mxu0 0.0
      %762 = vmatprep.subr.mxu0 0.0
      %763 = vmatpush1.msra.mxu0 0.0
      %764 = vmatprep.subr.mxu0 0.0
      %765 = vmatpush1.msra.mxu0 0.0
      %766 = vmatprep.subr.mxu0 0.0
      %767 = vmatpush1.msra.mxu0 0.0
      %768 = vmatprep.subr.mxu0 0.0
      %769 = vmatpush1.msra.mxu0 0.0
      %770 = vmatprep.subr.mxu0 0.0
      %771 = vmatpush1.msra.mxu0 0.0
      %772 = vmatprep.subr.mxu0 0.0
      %773 = vmatpush1.msra.mxu0 0.0
      %774 = vmatprep.subr.mxu0 0.0
      %775 = vmatpush1.msra.mxu0 0.0
      %776 = vmatprep.subr.mxu0 0.0
      %777 = vmatpush1.msra.mxu0 0.0
      %778 = vmatprep.subr.mxu0 0.0
      %779 = vmatpush1.msra.mxu0 0.0
      %780 = vmatprep.subr.mxu0 0.0
      %781 = vmatpush1.msra.mxu0 0.0
      %782 = vmatprep.subr.mxu0 0.0
      %783 = vmatpush1.msra.mxu0 0.0
      %784 = vmatprep.subr.mxu0 0.0
      %785 = vmatpush1.msra.mxu0 0.0
      %786 = vmatprep.subr.mxu0 0.0
      %787 = vmatpush1.msra.mxu0 0.0
      %788 = vmatprep.subr.mxu0 0.0
      %789 = vmatpush1.msra.mxu0 0.0
      %790 = vmatprep.subr.mxu0 0.0
      %791 = vmatpush1.msra.mxu0 0.0
      %792 = vmatprep.subr.mxu0 0.0
      %793 = vmatpush1.msra.mxu0 0.0
      %794 = vmatprep.subr.mxu0 0.0
      %795 = vmatpush1.msra.mxu0 0.0
      %796 = vmatprep.subr.mxu0 0.0
      %797 = vmatpush1.msra.mxu0 0.0
      %798 = vmatprep.subr.mxu0 0.0
      %799 = vmatpush1.msra.mxu0 0.0
      %800 = vmatprep.subr.mxu0 0.0
      %801 = vmatpush1.msra.mxu0 0.0
      %802 = vmatprep.subr.mxu0 0.0
      %803 = vmatpush1.msra.mxu0 0.0
      %804 = vmatprep.subr.mxu0 0.0
      %805 = vmatpush1.msra.mxu0 0.0
      %806 = vmatprep.subr.mxu0 0.0
      %807 = vmatpush1.msra.mxu0 0.0
      %808 = vmatprep.subr.mxu0 0.0
      %809 = vmatpush1.msra.mxu0 0.0
      %810 = vmatprep.subr.mxu0 0.0
      %811 = vmatpush1.msra.mxu0 0.0
      %812 = vmatprep.mubr.f32.mxu0 0.0
      %813 = vmatmul.mubr.f32.gmra.mrb[0].mxu0 %v701
      %v814 = vpop.f32.mrb[0].mxu0
      %v815 = vadd.f32 %v697, %v814
      %v816 = vpop.f32.mrb[0].mxu0
      %817 = vmatprep.mubr.f32.mxu0 0.0
      %818 = vmatmul.mubr.f32.gmra.mrb[0].mxu0 %v704
      %v819 = vpop.f32.mrb[0].mxu0
      %v820 = vadd.f32 %v697, %v819
      %v821 = vpop.f32.mrb[0].mxu0
      %822 = vmatprep.mubr.f32.mxu0 0.0
      %823 = vmatmul.mubr.f32.gmra.mrb[0].mxu0 %v707
      %v824 = vpop.f32.mrb[0].mxu0
      %v825 = vadd.f32 %v697, %v824
      %v826 = vpop.f32.mrb[0].mxu0
      %827 = vmatprep.mubr.f32.mxu0 0.0
      %828 = vmatmul.mubr.f32.gmra.mrb[0].mxu0 %v710
      %v829 = vpop.f32.mrb[0].mxu0
      %v830 = vadd.f32 %v697, %v829
      %v831 = vpop.f32.mrb[0].mxu0
      %832 = vmatprep.mubr.f32.mxu0 0.0
      %833 = vmatmul.mubr.f32.gmra.mrb[0].mxu0 %v713
      %v834 = vpop.f32.mrb[0].mxu0
      %v835 = vadd.f32 %v697, %v834
      %v836 = vpop.f32.mrb[0].mxu0
      %837 = vmatprep.mubr.f32.mxu0 0.0
      %838 = vmatmul.mubr.f32.gmra.mrb[0].mxu0 %v716
      %v839 = vpop.f32.mrb[0].mxu0
      %v840 = vadd.f32 %v697, %v839
      %v841 = vpop.f32.mrb[0].mxu0
      %842 = vmatprep.mubr.f32.mxu0 0.0
      %843 = vmatmul.mubr.f32.gmra.mrb[0].mxu0 %v719
      %v844 = vpop.f32.mrb[0].mxu0
      %v845 = vadd.f32 %v697, %v844
      %v846 = vpop.f32.mrb[0].mxu0
      %847 = vmatprep.mubr.f32.mxu0 0.0
      %848 = vmatmul.mubr.f32.gmra.mrb[0].mxu0 %v722
      %v849 = vpop.f32.mrb[0].mxu0
      %v850 = vadd.f32 %v697, %v849
      %v851 = vpop.f32.mrb[0].mxu0
      %852 = vmatprep.mubr.f32.mxu0 0.0
      %853 = vmatmul.mubr.f32.gmra.mrb[0].mxu0 %v725
      %v854 = vpop.f32.mrb[0].mxu0
      %v855 = vadd.f32 %v697, %v854
      %v856 = vpop.f32.mrb[0].mxu0
      %857 = vmatprep.mubr.f32.mxu0 0.0
      %858 = vmatmul.mubr.f32.gmra.mrb[0].mxu0 %v728
      %v859 = vpop.f32.mrb[0].mxu0
      %v860 = vadd.f32 %v697, %v859
      %v861 = vpop.f32.mrb[0].mxu0
      %862 = vmatprep.mubr.f32.mxu0 0.0
      %863 = vmatmul.mubr.f32.gmra.mrb[0].mxu0 %v731
      %v864 = vpop.f32.mrb[0].mxu0
      %v865 = vadd.f32 %v697, %v864
      %v866 = vpop.f32.mrb[0].mxu0
      %867 = vmatprep.mubr.f32.mxu0 0.0
      %868 = vmatmul.mubr.f32.gmra.mrb[0].mxu0 %v734
      %v869 = vpop.f32.mrb[0].mxu0
      %v870 = vadd.f32 %v697, %v869
      %v871 = vpop.f32.mrb[0].mxu0
      %872 = vmatprep.mubr.f32.mxu0 0.0
      %873 = vmatmul.mubr.f32.gmra.mrb[0].mxu0 %v737
      %v874 = vpop.f32.mrb[0].mxu0
      %v875 = vadd.f32 %v697, %v874
      %v876 = vpop.f32.mrb[0].mxu0
      %877 = vmatprep.mubr.f32.mxu0 0.0
      %878 = vmatmul.mubr.f32.gmra.mrb[0].mxu0 %v740
      %v879 = vpop.f32.mrb[0].mxu0
      %v880 = vadd.f32 %v697, %v879
      %v881 = vpop.f32.mrb[0].mxu0
      %882 = vmatprep.mubr.f32.mxu0 0.0
      %883 = vmatmul.mubr.f32.gmra.mrb[0].mxu0 %v743
      %v884 = vpop.f32.mrb[0].mxu0
      %v885 = vadd.f32 %v697, %v884
      %v886 = vpop.f32.mrb[0].mxu0
      %887 = vmatprep.mubr.f32.mxu0 0.0
      %888 = vmatmul.mubr.f32.gmra.mrb[0].mxu0 %v746
      %v889 = vpop.f32.mrb[0].mxu0
      %v890 = vadd.f32 %v697, %v889
      %v891 = vpop.f32.mrb[0].mxu0
      %892 = vdwg.mxu0
      %v893 = vxor.u32 %v815, 2147483648
      %v894 = vxor.u32 %v820, 2147483648
      %v895 = vxor.u32 %v825, 2147483648
      %v896 = vxor.u32 %v830, 2147483648
      %v897 = vxor.u32 %v835, 2147483648
      %v898 = vxor.u32 %v840, 2147483648
      %v899 = vxor.u32 %v845, 2147483648
      %v900 = vxor.u32 %v850, 2147483648
      %v901 = vxor.u32 %v855, 2147483648
      %v902 = vxor.u32 %v860, 2147483648
      %v903 = vxor.u32 %v865, 2147483648
      %v904 = vxor.u32 %v870, 2147483648
      %v905 = vxor.u32 %v875, 2147483648
      %v906 = vxor.u32 %v880, 2147483648
      %v907 = vxor.u32 %v885, 2147483648
      %v908 = vxor.u32 %v890, 2147483648
      %v909 = vmul.f32 %v893, 1.442695
      %v910 = vpow.pop %v909
      %v911 = vmul.f32 %v894, 1.442695
      %v912 = vpow.pop %v911
      %v913 = vmul.f32 %v895, 1.442695
      %v914 = vpow.pop %v913
      %v915 = vmul.f32 %v896, 1.442695
      %v916 = vpow.pop %v915
      %v917 = vmul.f32 %v897, 1.442695
      %v918 = vpow.pop %v917
      %v919 = vmul.f32 %v898, 1.442695
      %v920 = vpow.pop %v919
      %v921 = vmul.f32 %v899, 1.442695
      %v922 = vpow.pop %v921
      %v923 = vmul.f32 %v900, 1.442695
      %v924 = vpow.pop %v923
      %v925 = vmul.f32 %v901, 1.442695
      %v926 = vpow.pop %v925
      %v927 = vmul.f32 %v902, 1.442695
      %v928 = vpow.pop %v927
      %v929 = vmul.f32 %v903, 1.442695
      %v930 = vpow.pop %v929
      %v931 = vmul.f32 %v904, 1.442695
      %v932 = vpow.pop %v931
      %v933 = vmul.f32 %v905, 1.442695
      %v934 = vpow.pop %v933
      %v935 = vmul.f32 %v906, 1.442695
      %v936 = vpow.pop %v935
      %v937 = vmul.f32 %v907, 1.442695
      %v938 = vpow.pop %v937
      %v939 = vmul.f32 %v908, 1.442695
      %v940 = vpow.pop %v939
      %v941 = vadd.f32 %v910, 1.0
      %v942 = vadd.f32 %v912, 1.0
      %v943 = vadd.f32 %v914, 1.0
      %v944 = vadd.f32 %v916, 1.0
      %v945 = vadd.f32 %v918, 1.0
      %v946 = vadd.f32 %v920, 1.0
      %v947 = vadd.f32 %v922, 1.0
      %v948 = vadd.f32 %v924, 1.0
      %v949 = vadd.f32 %v926, 1.0
      %v950 = vadd.f32 %v928, 1.0
      %v951 = vadd.f32 %v930, 1.0
      %v952 = vadd.f32 %v932, 1.0
      %v953 = vadd.f32 %v934, 1.0
      %v954 = vadd.f32 %v936, 1.0
      %v955 = vadd.f32 %v938, 1.0
      %v956 = vadd.f32 %v940, 1.0
      %v957 = vrcp.pop %v941
      %v958 = vmul.f32 1.0, %v957
      %v959 = vrcp.pop %v942
      %v960 = vmul.f32 1.0, %v959
      %v961 = vrcp.pop %v943
      %v962 = vmul.f32 1.0, %v961
      %v963 = vrcp.pop %v944
      %v964 = vmul.f32 1.0, %v963
      %v965 = vrcp.pop %v945
      %v966 = vmul.f32 1.0, %v965
      %v967 = vrcp.pop %v946
      %v968 = vmul.f32 1.0, %v967
      %v969 = vrcp.pop %v947
      %v970 = vmul.f32 1.0, %v969
      %v971 = vrcp.pop %v948
      %v972 = vmul.f32 1.0, %v971
      %v973 = vrcp.pop %v949
      %v974 = vmul.f32 1.0, %v973
      %v975 = vrcp.pop %v950
      %v976 = vmul.f32 1.0, %v975
      %v977 = vrcp.pop %v951
      %v978 = vmul.f32 1.0, %v977
      %v979 = vrcp.pop %v952
      %v980 = vmul.f32 1.0, %v979
      %v981 = vrcp.pop %v953
      %v982 = vmul.f32 1.0, %v981
      %v983 = vrcp.pop %v954
      %v984 = vmul.f32 1.0, %v983
      %v985 = vrcp.pop %v955
      %v986 = vmul.f32 1.0, %v985
      %v987 = vrcp.pop %v956
      %v988 = vmul.f32 1.0, %v987
      %v989 = vmul.f32 %v815, %v958
      %v990 = vmul.f32 %v820, %v960
      %v991 = vmul.f32 %v825, %v962
      %v992 = vmul.f32 %v830, %v964
      %v993 = vmul.f32 %v835, %v966
      %v994 = vmul.f32 %v840, %v968
      %v995 = vmul.f32 %v845, %v970
      %v996 = vmul.f32 %v850, %v972
      %v997 = vmul.f32 %v855, %v974
      %v998 = vmul.f32 %v860, %v976
      %v999 = vmul.f32 %v865, %v978
      %v1000 = vmul.f32 %v870, %v980
      %v1001 = vmul.f32 %v875, %v982
      %v1002 = vmul.f32 %v880, %v984
      %v1003 = vmul.f32 %v885, %v986
      %v1004 = vmul.f32 %v890, %v988
      %s1005 = smul.u32 %s343, 16
      %s1006 = smul.addr %s1005, 8
      %s1007 = scalar_lea.vmem %s6, %s1006
      %v1008 = vld [vmem:[%s1007] sm:$0xff]
      %v1009 = vld [vmem:[%s1007 + $0x8] sm:$0xff]
      %v1010 = vld [vmem:[%s1007 + $0x10] sm:$0xff]
      %v1011 = vld [vmem:[%s1007 + $0x18] sm:$0xff]
      %v1012 = vld [vmem:[%s1007 + $0x20] sm:$0xff]
      %v1013 = vld [vmem:[%s1007 + $0x28] sm:$0xff]
      %v1014 = vld [vmem:[%s1007 + $0x30] sm:$0xff]
      %v1015 = vld [vmem:[%s1007 + $0x38] sm:$0xff]
      %v1016 = vld [vmem:[%s1007 + $0x40] sm:$0xff]
      %v1017 = vld [vmem:[%s1007 + $0x48] sm:$0xff]
      %v1018 = vld [vmem:[%s1007 + $0x50] sm:$0xff]
      %v1019 = vld [vmem:[%s1007 + $0x58] sm:$0xff]
      %v1020 = vld [vmem:[%s1007 + $0x60] sm:$0xff]
      %v1021 = vld [vmem:[%s1007 + $0x68] sm:$0xff]
      %v1022 = vld [vmem:[%s1007 + $0x70] sm:$0xff]
      %v1023 = vld [vmem:[%s1007 + $0x78] sm:$0xff]
      %s1024 = smul.u32 %s343, 2
      %s1025 = scalar_lea.vmem %s7, %s1024
      %v1026 = vld [vmem:[%s1025] sm:$0x3]
      %v1028 = vlaneseq
      %v1029 = vshrl.u32 %v1028, 7
      %v1030 = vsub.s32 0, %v1029
      %v1031 = vrot.slane %v1026, %v1030
      %v1032 = vlaneseq
      %v1033 = vshrl.u32 %v1032, 7
      %v1034 = vsub.s32 1, %v1033
      %v1035 = vrot.slane %v1026, %v1034
      %vm1038 = vcmask 523264
      %v1040 = vsel %vm1038, %v989, 0
      %v1043 = vsel %vm1038, %v990, 0
      %v1046 = vsel %vm1038, %v991, 0
      %v1049 = vsel %vm1038, %v992, 0
      %v1052 = vsel %vm1038, %v993, 0
      %v1055 = vsel %vm1038, %v994, 0
      %v1058 = vsel %vm1038, %v995, 0
      %v1061 = vsel %vm1038, %v996, 0
      %v1064 = vsel %vm1038, %v997, 0
      %v1067 = vsel %vm1038, %v998, 0
      %v1070 = vsel %vm1038, %v999, 0
      %v1073 = vsel %vm1038, %v1000, 0
      %v1076 = vsel %vm1038, %v1001, 0
      %v1079 = vsel %vm1038, %v1002, 0
      %v1082 = vsel %vm1038, %v1003, 0
      %v1085 = vsel %vm1038, %v1004, 0
      %1087 = vmatprep.subr.mxu0 %v1009
      %1088 = vmatpush1.msra.mxu0 %v1008
      %1089 = vmatprep.subr.mxu0 %v1011
      %1090 = vmatpush1.msra.mxu0 %v1010
      %1091 = vmatprep.subr.mxu0 %v1013
      %1092 = vmatpush1.msra.mxu0 %v1012
      %1093 = vmatprep.subr.mxu0 %v1015
      %1094 = vmatpush1.msra.mxu0 %v1014
      %1095 = vmatprep.subr.mxu0 %v1017
      %1096 = vmatpush1.msra.mxu0 %v1016
      %1097 = vmatprep.subr.mxu0 %v1019
      %1098 = vmatpush1.msra.mxu0 %v1018
      %1099 = vmatprep.subr.mxu0 %v1021
      %1100 = vmatpush1.msra.mxu0 %v1020
      %1101 = vmatprep.subr.mxu0 %v1023
      %1102 = vmatpush1.msra.mxu0 %v1022
      %1103 = vmatprep.subr.mxu0 0.0
      %1104 = vmatpush1.msra.mxu0 0.0
      %1105 = vmatprep.subr.mxu0 0.0
      %1106 = vmatpush1.msra.mxu0 0.0
      %1107 = vmatprep.subr.mxu0 0.0
      %1108 = vmatpush1.msra.mxu0 0.0
      %1109 = vmatprep.subr.mxu0 0.0
      %1110 = vmatpush1.msra.mxu0 0.0
      %1111 = vmatprep.subr.mxu0 0.0
      %1112 = vmatpush1.msra.mxu0 0.0
      %1113 = vmatprep.subr.mxu0 0.0
      %1114 = vmatpush1.msra.mxu0 0.0
      %1115 = vmatprep.subr.mxu0 0.0
      %1116 = vmatpush1.msra.mxu0 0.0
      %1117 = vmatprep.subr.mxu0 0.0
      %1118 = vmatpush1.msra.mxu0 0.0
      %1119 = vmatprep.subr.mxu0 0.0
      %1120 = vmatpush1.msra.mxu0 0.0
      %1121 = vmatprep.subr.mxu0 0.0
      %1122 = vmatpush1.msra.mxu0 0.0
      %1123 = vmatprep.subr.mxu0 0.0
      %1124 = vmatpush1.msra.mxu0 0.0
      %1125 = vmatprep.subr.mxu0 0.0
      %1126 = vmatpush1.msra.mxu0 0.0
      %1127 = vmatprep.subr.mxu0 0.0
      %1128 = vmatpush1.msra.mxu0 0.0
      %1129 = vmatprep.subr.mxu0 0.0
      %1130 = vmatpush1.msra.mxu0 0.0
      %1131 = vmatprep.subr.mxu0 0.0
      %1132 = vmatpush1.msra.mxu0 0.0
      %1133 = vmatprep.subr.mxu0 0.0
      %1134 = vmatpush1.msra.mxu0 0.0
      %1135 = vmatprep.subr.mxu0 0.0
      %1136 = vmatpush1.msra.mxu0 0.0
      %1137 = vmatprep.subr.mxu0 0.0
      %1138 = vmatpush1.msra.mxu0 0.0
      %1139 = vmatprep.subr.mxu0 0.0
      %1140 = vmatpush1.msra.mxu0 0.0
      %1141 = vmatprep.subr.mxu0 0.0
      %1142 = vmatpush1.msra.mxu0 0.0
      %1143 = vmatprep.subr.mxu0 0.0
      %1144 = vmatpush1.msra.mxu0 0.0
      %1145 = vmatprep.subr.mxu0 0.0
      %1146 = vmatpush1.msra.mxu0 0.0
      %1147 = vmatprep.subr.mxu0 0.0
      %1148 = vmatpush1.msra.mxu0 0.0
      %1149 = vmatprep.subr.mxu0 0.0
      %1150 = vmatpush1.msra.mxu0 0.0
      %1151 = vmatprep.mubr.f32.mxu0 0.0
      %1152 = vmatmul.mubr.f32.gmra.mrb[0].mxu0 %v1040
      %v1153 = vpop.f32.mrb[0].mxu0
      %v1154 = vadd.f32 %v1031, %v1153
      %v1155 = vpop.f32.mrb[0].mxu0
      %v1156 = vadd.f32 %v1035, %v1155
      %1157 = vmatprep.mubr.f32.mxu0 0.0
      %1158 = vmatmul.mubr.f32.gmra.mrb[0].mxu0 %v1043
      %v1159 = vpop.f32.mrb[0].mxu0
      %v1160 = vadd.f32 %v1031, %v1159
      %v1161 = vpop.f32.mrb[0].mxu0
      %v1162 = vadd.f32 %v1035, %v1161
      %1163 = vmatprep.mubr.f32.mxu0 0.0
      %1164 = vmatmul.mubr.f32.gmra.mrb[0].mxu0 %v1046
      %v1165 = vpop.f32.mrb[0].mxu0
      %v1166 = vadd.f32 %v1031, %v1165
      %v1167 = vpop.f32.mrb[0].mxu0
      %v1168 = vadd.f32 %v1035, %v1167
      %1169 = vmatprep.mubr.f32.mxu0 0.0
      %1170 = vmatmul.mubr.f32.gmra.mrb[0].mxu0 %v1049
      %v1171 = vpop.f32.mrb[0].mxu0
      %v1172 = vadd.f32 %v1031, %v1171
      %v1173 = vpop.f32.mrb[0].mxu0
      %v1174 = vadd.f32 %v1035, %v1173
      %1175 = vmatprep.mubr.f32.mxu0 0.0
      %1176 = vmatmul.mubr.f32.gmra.mrb[0].mxu0 %v1052
      %v1177 = vpop.f32.mrb[0].mxu0
      %v1178 = vadd.f32 %v1031, %v1177
      %v1179 = vpop.f32.mrb[0].mxu0
      %v1180 = vadd.f32 %v1035, %v1179
      %1181 = vmatprep.mubr.f32.mxu0 0.0
      %1182 = vmatmul.mubr.f32.gmra.mrb[0].mxu0 %v1055
      %v1183 = vpop.f32.mrb[0].mxu0
      %v1184 = vadd.f32 %v1031, %v1183
      %v1185 = vpop.f32.mrb[0].mxu0
      %v1186 = vadd.f32 %v1035, %v1185
      %1187 = vmatprep.mubr.f32.mxu0 0.0
      %1188 = vmatmul.mubr.f32.gmra.mrb[0].mxu0 %v1058
      %v1189 = vpop.f32.mrb[0].mxu0
      %v1190 = vadd.f32 %v1031, %v1189
      %v1191 = vpop.f32.mrb[0].mxu0
      %v1192 = vadd.f32 %v1035, %v1191
      %1193 = vmatprep.mubr.f32.mxu0 0.0
      %1194 = vmatmul.mubr.f32.gmra.mrb[0].mxu0 %v1061
      %v1195 = vpop.f32.mrb[0].mxu0
      %v1196 = vadd.f32 %v1031, %v1195
      %v1197 = vpop.f32.mrb[0].mxu0
      %v1198 = vadd.f32 %v1035, %v1197
      %1199 = vmatprep.mubr.f32.mxu0 0.0
      %1200 = vmatmul.mubr.f32.gmra.mrb[0].mxu0 %v1064
      %v1201 = vpop.f32.mrb[0].mxu0
      %v1202 = vadd.f32 %v1031, %v1201
      %v1203 = vpop.f32.mrb[0].mxu0
      %v1204 = vadd.f32 %v1035, %v1203
      %1205 = vmatprep.mubr.f32.mxu0 0.0
      %1206 = vmatmul.mubr.f32.gmra.mrb[0].mxu0 %v1067
      %v1207 = vpop.f32.mrb[0].mxu0
      %v1208 = vadd.f32 %v1031, %v1207
      %v1209 = vpop.f32.mrb[0].mxu0
      %v1210 = vadd.f32 %v1035, %v1209
      %1211 = vmatprep.mubr.f32.mxu0 0.0
      %1212 = vmatmul.mubr.f32.gmra.mrb[0].mxu0 %v1070
      %v1213 = vpop.f32.mrb[0].mxu0
      %v1214 = vadd.f32 %v1031, %v1213
      %v1215 = vpop.f32.mrb[0].mxu0
      %v1216 = vadd.f32 %v1035, %v1215
      %1217 = vmatprep.mubr.f32.mxu0 0.0
      %1218 = vmatmul.mubr.f32.gmra.mrb[0].mxu0 %v1073
      %v1219 = vpop.f32.mrb[0].mxu0
      %v1220 = vadd.f32 %v1031, %v1219
      %v1221 = vpop.f32.mrb[0].mxu0
      %v1222 = vadd.f32 %v1035, %v1221
      %1223 = vmatprep.mubr.f32.mxu0 0.0
      %1224 = vmatmul.mubr.f32.gmra.mrb[0].mxu0 %v1076
      %v1225 = vpop.f32.mrb[0].mxu0
      %v1226 = vadd.f32 %v1031, %v1225
      %v1227 = vpop.f32.mrb[0].mxu0
      %v1228 = vadd.f32 %v1035, %v1227
      %1229 = vmatprep.mubr.f32.mxu0 0.0
      %1230 = vmatmul.mubr.f32.gmra.mrb[0].mxu0 %v1079
      %v1231 = vpop.f32.mrb[0].mxu0
      %v1232 = vadd.f32 %v1031, %v1231
      %v1233 = vpop.f32.mrb[0].mxu0
      %v1234 = vadd.f32 %v1035, %v1233
      %1235 = vmatprep.mubr.f32.mxu0 0.0
      %1236 = vmatmul.mubr.f32.gmra.mrb[0].mxu0 %v1082
      %v1237 = vpop.f32.mrb[0].mxu0
      %v1238 = vadd.f32 %v1031, %v1237
      %v1239 = vpop.f32.mrb[0].mxu0
      %v1240 = vadd.f32 %v1035, %v1239
      %1241 = vmatprep.mubr.f32.mxu0 0.0
      %1242 = vmatmul.mubr.f32.gmra.mrb[0].mxu0 %v1085
      %v1243 = vpop.f32.mrb[0].mxu0
      %v1244 = vadd.f32 %v1031, %v1243
      %v1245 = vpop.f32.mrb[0].mxu0
      %v1246 = vadd.f32 %v1035, %v1245
      %1247 = vdwg.mxu0
      %v1248 = vxor.u32 %v1154, 2147483648
      %v1249 = vxor.u32 %v1160, 2147483648
      %v1250 = vxor.u32 %v1166, 2147483648
      %v1251 = vxor.u32 %v1172, 2147483648
      %v1252 = vxor.u32 %v1178, 2147483648
      %v1253 = vxor.u32 %v1184, 2147483648
      %v1254 = vxor.u32 %v1190, 2147483648
      %v1255 = vxor.u32 %v1196, 2147483648
      %v1256 = vxor.u32 %v1202, 2147483648
      %v1257 = vxor.u32 %v1208, 2147483648
      %v1258 = vxor.u32 %v1214, 2147483648
      %v1259 = vxor.u32 %v1220, 2147483648
      %v1260 = vxor.u32 %v1226, 2147483648
      %v1261 = vxor.u32 %v1232, 2147483648
      %v1262 = vxor.u32 %v1238, 2147483648
      %v1263 = vxor.u32 %v1244, 2147483648
      %v1264 = vmul.f32 %v1248, 1.442695
      %v1265 = vpow.pop %v1264
      %v1266 = vmul.f32 %v1249, 1.442695
      %v1267 = vpow.pop %v1266
      %v1268 = vmul.f32 %v1250, 1.442695
      %v1269 = vpow.pop %v1268
      %v1270 = vmul.f32 %v1251, 1.442695
      %v1271 = vpow.pop %v1270
      %v1272 = vmul.f32 %v1252, 1.442695
      %v1273 = vpow.pop %v1272
      %v1274 = vmul.f32 %v1253, 1.442695
      %v1275 = vpow.pop %v1274
      %v1276 = vmul.f32 %v1254, 1.442695
      %v1277 = vpow.pop %v1276
      %v1278 = vmul.f32 %v1255, 1.442695
      %v1279 = vpow.pop %v1278
      %v1280 = vmul.f32 %v1256, 1.442695
      %v1281 = vpow.pop %v1280
      %v1282 = vmul.f32 %v1257, 1.442695
      %v1283 = vpow.pop %v1282
      %v1284 = vmul.f32 %v1258, 1.442695
      %v1285 = vpow.pop %v1284
      %v1286 = vmul.f32 %v1259, 1.442695
      %v1287 = vpow.pop %v1286
      %v1288 = vmul.f32 %v1260, 1.442695
      %v1289 = vpow.pop %v1288
      %v1290 = vmul.f32 %v1261, 1.442695
      %v1291 = vpow.pop %v1290
      %v1292 = vmul.f32 %v1262, 1.442695
      %v1293 = vpow.pop %v1292
      %v1294 = vmul.f32 %v1263, 1.442695
      %v1295 = vpow.pop %v1294
      %v1296 = vadd.f32 %v1265, 1.0
      %v1297 = vadd.f32 %v1267, 1.0
      %v1298 = vadd.f32 %v1269, 1.0
      %v1299 = vadd.f32 %v1271, 1.0
      %v1300 = vadd.f32 %v1273, 1.0
      %v1301 = vadd.f32 %v1275, 1.0
      %v1302 = vadd.f32 %v1277, 1.0
      %v1303 = vadd.f32 %v1279, 1.0
      %v1304 = vadd.f32 %v1281, 1.0
      %v1305 = vadd.f32 %v1283, 1.0
      %v1306 = vadd.f32 %v1285, 1.0
      %v1307 = vadd.f32 %v1287, 1.0
      %v1308 = vadd.f32 %v1289, 1.0
      %v1309 = vadd.f32 %v1291, 1.0
      %v1310 = vadd.f32 %v1293, 1.0
      %v1311 = vadd.f32 %v1295, 1.0
      %v1312 = vrcp.pop %v1296
      %v1313 = vmul.f32 1.0, %v1312
      %v1314 = vrcp.pop %v1297
      %v1315 = vmul.f32 1.0, %v1314
      %v1316 = vrcp.pop %v1298
      %v1317 = vmul.f32 1.0, %v1316
      %v1318 = vrcp.pop %v1299
      %v1319 = vmul.f32 1.0, %v1318
      %v1320 = vrcp.pop %v1300
      %v1321 = vmul.f32 1.0, %v1320
      %v1322 = vrcp.pop %v1301
      %v1323 = vmul.f32 1.0, %v1322
      %v1324 = vrcp.pop %v1302
      %v1325 = vmul.f32 1.0, %v1324
      %v1326 = vrcp.pop %v1303
      %v1327 = vmul.f32 1.0, %v1326
      %v1328 = vrcp.pop %v1304
      %v1329 = vmul.f32 1.0, %v1328
      %v1330 = vrcp.pop %v1305
      %v1331 = vmul.f32 1.0, %v1330
      %v1332 = vrcp.pop %v1306
      %v1333 = vmul.f32 1.0, %v1332
      %v1334 = vrcp.pop %v1307
      %v1335 = vmul.f32 1.0, %v1334
      %v1336 = vrcp.pop %v1308
      %v1337 = vmul.f32 1.0, %v1336
      %v1338 = vrcp.pop %v1309
      %v1339 = vmul.f32 1.0, %v1338
      %v1340 = vrcp.pop %v1310
      %v1341 = vmul.f32 1.0, %v1340
      %v1342 = vrcp.pop %v1311
      %v1343 = vmul.f32 1.0, %v1342
      %vm1344 = vcmask 138240
      %v1345 = vsel %vm1344, %v1156, -inf
      %1346 = vmax.xlane.f32.xlu0 %v1345
      %v1347 = vpop.xlane.xlu0 %1346
      %v1348 = vsel %vm1344, %v1162, -inf
      %1349 = vmax.xlane.f32.xlu0 %v1348
      %v1350 = vpop.xlane.xlu0 %1349
      %v1351 = vsel %vm1344, %v1168, -inf
      %1352 = vmax.xlane.f32.xlu0 %v1351
      %v1353 = vpop.xlane.xlu0 %1352
      %v1354 = vsel %vm1344, %v1174, -inf
      %1355 = vmax.xlane.f32.xlu0 %v1354
      %v1356 = vpop.xlane.xlu0 %1355
      %v1357 = vsel %vm1344, %v1180, -inf
      %1358 = vmax.xlane.f32.xlu0 %v1357
      %v1359 = vpop.xlane.xlu0 %1358
      %v1360 = vsel %vm1344, %v1186, -inf
      %1361 = vmax.xlane.f32.xlu0 %v1360
      %v1362 = vpop.xlane.xlu0 %1361
      %v1363 = vsel %vm1344, %v1192, -inf
      %1364 = vmax.xlane.f32.xlu0 %v1363
      %v1365 = vpop.xlane.xlu0 %1364
      %v1366 = vsel %vm1344, %v1198, -inf
      %1367 = vmax.xlane.f32.xlu0 %v1366
      %v1368 = vpop.xlane.xlu0 %1367
      %v1369 = vsel %vm1344, %v1204, -inf
      %1370 = vmax.xlane.f32.xlu0 %v1369
      %v1371 = vpop.xlane.xlu0 %1370
      %v1372 = vsel %vm1344, %v1210, -inf
      %1373 = vmax.xlane.f32.xlu0 %v1372
      %v1374 = vpop.xlane.xlu0 %1373
      %v1375 = vsel %vm1344, %v1216, -inf
      %1376 = vmax.xlane.f32.xlu0 %v1375
      %v1377 = vpop.xlane.xlu0 %1376
      %v1378 = vsel %vm1344, %v1222, -inf
      %1379 = vmax.xlane.f32.xlu0 %v1378
      %v1380 = vpop.xlane.xlu0 %1379
      %v1381 = vsel %vm1344, %v1228, -inf
      %1382 = vmax.xlane.f32.xlu0 %v1381
      %v1383 = vpop.xlane.xlu0 %1382
      %v1384 = vsel %vm1344, %v1234, -inf
      %1385 = vmax.xlane.f32.xlu0 %v1384
      %v1386 = vpop.xlane.xlu0 %1385
      %v1387 = vsel %vm1344, %v1240, -inf
      %1388 = vmax.xlane.f32.xlu0 %v1387
      %v1389 = vpop.xlane.xlu0 %1388
      %v1390 = vsel %vm1344, %v1246, -inf
      %1391 = vmax.xlane.f32.xlu0 %v1390
      %v1392 = vpop.xlane.xlu0 %1391
      %vm1393 = vcmask 277640
      %v1394 = vsel %vm1393, %v1156, -inf
      %1395 = vmax.xlane.f32.xlu0 %v1394
      %v1396 = vpop.xlane.xlu0 %1395
      %v1397 = vsel %vm1393, %v1162, -inf
      %1398 = vmax.xlane.f32.xlu0 %v1397
      %v1399 = vpop.xlane.xlu0 %1398
      %v1400 = vsel %vm1393, %v1168, -inf
      %1401 = vmax.xlane.f32.xlu0 %v1400
      %v1402 = vpop.xlane.xlu0 %1401
      %v1403 = vsel %vm1393, %v1174, -inf
      %1404 = vmax.xlane.f32.xlu0 %v1403
      %v1405 = vpop.xlane.xlu0 %1404
      %v1406 = vsel %vm1393, %v1180, -inf
      %1407 = vmax.xlane.f32.xlu0 %v1406
      %v1408 = vpop.xlane.xlu0 %1407
      %v1409 = vsel %vm1393, %v1186, -inf
      %1410 = vmax.xlane.f32.xlu0 %v1409
      %v1411 = vpop.xlane.xlu0 %1410
      %v1412 = vsel %vm1393, %v1192, -inf
      %1413 = vmax.xlane.f32.xlu0 %v1412
      %v1414 = vpop.xlane.xlu0 %1413
      %v1415 = vsel %vm1393, %v1198, -inf
      %1416 = vmax.xlane.f32.xlu0 %v1415
      %v1417 = vpop.xlane.xlu0 %1416
      %v1418 = vsel %vm1393, %v1204, -inf
      %1419 = vmax.xlane.f32.xlu0 %v1418
      %v1420 = vpop.xlane.xlu0 %1419
      %v1421 = vsel %vm1393, %v1210, -inf
      %1422 = vmax.xlane.f32.xlu0 %v1421
      %v1423 = vpop.xlane.xlu0 %1422
      %v1424 = vsel %vm1393, %v1216, -inf
      %1425 = vmax.xlane.f32.xlu0 %v1424
      %v1426 = vpop.xlane.xlu0 %1425
      %v1427 = vsel %vm1393, %v1222, -inf
      %1428 = vmax.xlane.f32.xlu0 %v1427
      %v1429 = vpop.xlane.xlu0 %1428
      %v1430 = vsel %vm1393, %v1228, -inf
      %1431 = vmax.xlane.f32.xlu0 %v1430
      %v1432 = vpop.xlane.xlu0 %1431
      %v1433 = vsel %vm1393, %v1234, -inf
      %1434 = vmax.xlane.f32.xlu0 %v1433
      %v1435 = vpop.xlane.xlu0 %1434
      %v1436 = vsel %vm1393, %v1240, -inf
      %1437 = vmax.xlane.f32.xlu0 %v1436
      %v1438 = vpop.xlane.xlu0 %1437
      %v1439 = vsel %vm1393, %v1246, -inf
      %1440 = vmax.xlane.f32.xlu0 %v1439
      %v1441 = vpop.xlane.xlu0 %1440
      %vm1442 = vcmask 417040
      %v1443 = vsel %vm1442, %v1156, -inf
      %1444 = vmax.xlane.f32.xlu0 %v1443
      %v1445 = vpop.xlane.xlu0 %1444
      %v1446 = vsel %vm1442, %v1162, -inf
      %1447 = vmax.xlane.f32.xlu0 %v1446
      %v1448 = vpop.xlane.xlu0 %1447
      %v1449 = vsel %vm1442, %v1168, -inf
      %1450 = vmax.xlane.f32.xlu0 %v1449
      %v1451 = vpop.xlane.xlu0 %1450
      %v1452 = vsel %vm1442, %v1174, -inf
      %1453 = vmax.xlane.f32.xlu0 %v1452
      %v1454 = vpop.xlane.xlu0 %1453
      %v1455 = vsel %vm1442, %v1180, -inf
      %1456 = vmax.xlane.f32.xlu0 %v1455
      %v1457 = vpop.xlane.xlu0 %1456
      %v1458 = vsel %vm1442, %v1186, -inf
      %1459 = vmax.xlane.f32.xlu0 %v1458
      %v1460 = vpop.xlane.xlu0 %1459
      %v1461 = vsel %vm1442, %v1192, -inf
      %1462 = vmax.xlane.f32.xlu0 %v1461
      %v1463 = vpop.xlane.xlu0 %1462
      %v1464 = vsel %vm1442, %v1198, -inf
      %1465 = vmax.xlane.f32.xlu0 %v1464
      %v1466 = vpop.xlane.xlu0 %1465
      %v1467 = vsel %vm1442, %v1204, -inf
      %1468 = vmax.xlane.f32.xlu0 %v1467
      %v1469 = vpop.xlane.xlu0 %1468
      %v1470 = vsel %vm1442, %v1210, -inf
      %1471 = vmax.xlane.f32.xlu0 %v1470
      %v1472 = vpop.xlane.xlu0 %1471
      %v1473 = vsel %vm1442, %v1216, -inf
      %1474 = vmax.xlane.f32.xlu0 %v1473
      %v1475 = vpop.xlane.xlu0 %1474
      %v1476 = vsel %vm1442, %v1222, -inf
      %1477 = vmax.xlane.f32.xlu0 %v1476
      %v1478 = vpop.xlane.xlu0 %1477
      %v1479 = vsel %vm1442, %v1228, -inf
      %1480 = vmax.xlane.f32.xlu0 %v1479
      %v1481 = vpop.xlane.xlu0 %1480
      %v1482 = vsel %vm1442, %v1234, -inf
      %1483 = vmax.xlane.f32.xlu0 %v1482
      %v1484 = vpop.xlane.xlu0 %1483
      %v1485 = vsel %vm1442, %v1240, -inf
      %1486 = vmax.xlane.f32.xlu0 %v1485
      %v1487 = vpop.xlane.xlu0 %1486
      %v1488 = vsel %vm1442, %v1246, -inf
      %1489 = vmax.xlane.f32.xlu0 %v1488
      %v1490 = vpop.xlane.xlu0 %1489
      %vm1491 = vcmask 556440
      %v1492 = vsel %vm1491, %v1156, -inf
      %1493 = vmax.xlane.f32.xlu0 %v1492
      %v1494 = vpop.xlane.xlu0 %1493
      %v1495 = vsel %vm1491, %v1162, -inf
      %1496 = vmax.xlane.f32.xlu0 %v1495
      %v1497 = vpop.xlane.xlu0 %1496
      %v1498 = vsel %vm1491, %v1168, -inf
      %1499 = vmax.xlane.f32.xlu0 %v1498
      %v1500 = vpop.xlane.xlu0 %1499
      %v1501 = vsel %vm1491, %v1174, -inf
      %1502 = vmax.xlane.f32.xlu0 %v1501
      %v1503 = vpop.xlane.xlu0 %1502
      %v1504 = vsel %vm1491, %v1180, -inf
      %1505 = vmax.xlane.f32.xlu0 %v1504
      %v1506 = vpop.xlane.xlu0 %1505
      %v1507 = vsel %vm1491, %v1186, -inf
      %1508 = vmax.xlane.f32.xlu0 %v1507
      %v1509 = vpop.xlane.xlu0 %1508
      %v1510 = vsel %vm1491, %v1192, -inf
      %1511 = vmax.xlane.f32.xlu0 %v1510
      %v1512 = vpop.xlane.xlu0 %1511
      %v1513 = vsel %vm1491, %v1198, -inf
      %1514 = vmax.xlane.f32.xlu0 %v1513
      %v1515 = vpop.xlane.xlu0 %1514
      %v1516 = vsel %vm1491, %v1204, -inf
      %1517 = vmax.xlane.f32.xlu0 %v1516
      %v1518 = vpop.xlane.xlu0 %1517
      %v1519 = vsel %vm1491, %v1210, -inf
      %1520 = vmax.xlane.f32.xlu0 %v1519
      %v1521 = vpop.xlane.xlu0 %1520
      %v1522 = vsel %vm1491, %v1216, -inf
      %1523 = vmax.xlane.f32.xlu0 %v1522
      %v1524 = vpop.xlane.xlu0 %1523
      %v1525 = vsel %vm1491, %v1222, -inf
      %1526 = vmax.xlane.f32.xlu0 %v1525
      %v1527 = vpop.xlane.xlu0 %1526
      %v1528 = vsel %vm1491, %v1228, -inf
      %1529 = vmax.xlane.f32.xlu0 %v1528
      %v1530 = vpop.xlane.xlu0 %1529
      %v1531 = vsel %vm1491, %v1234, -inf
      %1532 = vmax.xlane.f32.xlu0 %v1531
      %v1533 = vpop.xlane.xlu0 %1532
      %v1534 = vsel %vm1491, %v1240, -inf
      %1535 = vmax.xlane.f32.xlu0 %v1534
      %v1536 = vpop.xlane.xlu0 %1535
      %v1537 = vsel %vm1491, %v1246, -inf
      %1538 = vmax.xlane.f32.xlu0 %v1537
      %v1539 = vpop.xlane.xlu0 %1538
      %vm1540 = vcmask 7168
      %v1541 = vsel %vm1540, %v1347, %v1396
      %v1542 = vsel %vm1540, %v1350, %v1399
      %v1543 = vsel %vm1540, %v1353, %v1402
      %v1544 = vsel %vm1540, %v1356, %v1405
      %v1545 = vsel %vm1540, %v1359, %v1408
      %v1546 = vsel %vm1540, %v1362, %v1411
      %v1547 = vsel %vm1540, %v1365, %v1414
      %v1548 = vsel %vm1540, %v1368, %v1417
      %v1549 = vsel %vm1540, %v1371, %v1420
      %v1550 = vsel %vm1540, %v1374, %v1423
      %v1551 = vsel %vm1540, %v1377, %v1426
      %v1552 = vsel %vm1540, %v1380, %v1429
      %v1553 = vsel %vm1540, %v1383, %v1432
      %v1554 = vsel %vm1540, %v1386, %v1435
      %v1555 = vsel %vm1540, %v1389, %v1438
      %v1556 = vsel %vm1540, %v1392, %v1441
      %vm1557 = vcmask 15360
      %v1558 = vsel %vm1557, %v1541, %v1445
      %v1559 = vsel %vm1557, %v1542, %v1448
      %v1560 = vsel %vm1557, %v1543, %v1451
      %v1561 = vsel %vm1557, %v1544, %v1454
      %v1562 = vsel %vm1557, %v1545, %v1457
      %v1563 = vsel %vm1557, %v1546, %v1460
      %v1564 = vsel %vm1557, %v1547, %v1463
      %v1565 = vsel %vm1557, %v1548, %v1466
      %v1566 = vsel %vm1557, %v1549, %v1469
      %v1567 = vsel %vm1557, %v1550, %v1472
      %v1568 = vsel %vm1557, %v1551, %v1475
      %v1569 = vsel %vm1557, %v1552, %v1478
      %v1570 = vsel %vm1557, %v1553, %v1481
      %v1571 = vsel %vm1557, %v1554, %v1484
      %v1572 = vsel %vm1557, %v1555, %v1487
      %v1573 = vsel %vm1557, %v1556, %v1490
      %vm1574 = vcmask 23552
      %v1575 = vsel %vm1574, %v1558, %v1494
      %v1576 = vsel %vm1574, %v1559, %v1497
      %v1577 = vsel %vm1574, %v1560, %v1500
      %v1578 = vsel %vm1574, %v1561, %v1503
      %v1579 = vsel %vm1574, %v1562, %v1506
      %v1580 = vsel %vm1574, %v1563, %v1509
      %v1581 = vsel %vm1574, %v1564, %v1512
      %v1582 = vsel %vm1574, %v1565, %v1515
      %v1583 = vsel %vm1574, %v1566, %v1518
      %v1584 = vsel %vm1574, %v1567, %v1521
      %v1585 = vsel %vm1574, %v1568, %v1524
      %v1586 = vsel %vm1574, %v1569, %v1527
      %v1587 = vsel %vm1574, %v1570, %v1530
      %v1588 = vsel %vm1574, %v1571, %v1533
      %v1589 = vsel %vm1574, %v1572, %v1536
      %v1590 = vsel %vm1574, %v1573, %v1539
      %v1591 = vld [vmem:[%s9] sm:$0xf]
      %vm1592 = vcmask 31744
      %v1594 = vsel %vm1592, %v1575, 0
      %v1597 = vsel %vm1592, %v1576, 0
      %v1600 = vsel %vm1592, %v1577, 0
      %v1603 = vsel %vm1592, %v1578, 0
      %v1606 = vsel %vm1592, %v1579, 0
      %v1609 = vsel %vm1592, %v1580, 0
      %v1612 = vsel %vm1592, %v1581, 0
      %v1615 = vsel %vm1592, %v1582, 0
      %v1618 = vsel %vm1592, %v1583, 0
      %v1621 = vsel %vm1592, %v1584, 0
      %v1624 = vsel %vm1592, %v1585, 0
      %v1627 = vsel %vm1592, %v1586, 0
      %v1630 = vsel %vm1592, %v1587, 0
      %v1633 = vsel %vm1592, %v1588, 0
      %v1636 = vsel %vm1592, %v1589, 0
      %v1639 = vsel %vm1592, %v1590, 0
      %vm1641 = vcmask 1043456
      %v1643 = vsel %vm1641, %v1591, 0
      %1645 = vmatprep.subr.mxu0 0.0
      %1646 = vmatpush1.msra.mxu0 %v1643
      %1647 = vmatprep.subr.mxu0 0.0
      %1648 = vmatpush1.msra.mxu0 0.0
      %1649 = vmatprep.subr.mxu0 0.0
      %1650 = vmatpush1.msra.mxu0 0.0
      %1651 = vmatprep.subr.mxu0 0.0
      %1652 = vmatpush1.msra.mxu0 0.0
      %1653 = vmatprep.subr.mxu0 0.0
      %1654 = vmatpush1.msra.mxu0 0.0
      %1655 = vmatprep.subr.mxu0 0.0
      %1656 = vmatpush1.msra.mxu0 0.0
      %1657 = vmatprep.subr.mxu0 0.0
      %1658 = vmatpush1.msra.mxu0 0.0
      %1659 = vmatprep.subr.mxu0 0.0
      %1660 = vmatpush1.msra.mxu0 0.0
      %1661 = vmatprep.subr.mxu0 0.0
      %1662 = vmatpush1.msra.mxu0 0.0
      %1663 = vmatprep.subr.mxu0 0.0
      %1664 = vmatpush1.msra.mxu0 0.0
      %1665 = vmatprep.subr.mxu0 0.0
      %1666 = vmatpush1.msra.mxu0 0.0
      %1667 = vmatprep.subr.mxu0 0.0
      %1668 = vmatpush1.msra.mxu0 0.0
      %1669 = vmatprep.subr.mxu0 0.0
      %1670 = vmatpush1.msra.mxu0 0.0
      %1671 = vmatprep.subr.mxu0 0.0
      %1672 = vmatpush1.msra.mxu0 0.0
      %1673 = vmatprep.subr.mxu0 0.0
      %1674 = vmatpush1.msra.mxu0 0.0
      %1675 = vmatprep.subr.mxu0 0.0
      %1676 = vmatpush1.msra.mxu0 0.0
      %1677 = vmatprep.subr.mxu0 0.0
      %1678 = vmatpush1.msra.mxu0 0.0
      %1679 = vmatprep.subr.mxu0 0.0
      %1680 = vmatpush1.msra.mxu0 0.0
      %1681 = vmatprep.subr.mxu0 0.0
      %1682 = vmatpush1.msra.mxu0 0.0
      %1683 = vmatprep.subr.mxu0 0.0
      %1684 = vmatpush1.msra.mxu0 0.0
      %1685 = vmatprep.subr.mxu0 0.0
      %1686 = vmatpush1.msra.mxu0 0.0
      %1687 = vmatprep.subr.mxu0 0.0
      %1688 = vmatpush1.msra.mxu0 0.0
      %1689 = vmatprep.subr.mxu0 0.0
      %1690 = vmatpush1.msra.mxu0 0.0
      %1691 = vmatprep.subr.mxu0 0.0
      %1692 = vmatpush1.msra.mxu0 0.0
      %1693 = vmatprep.subr.mxu0 0.0
      %1694 = vmatpush1.msra.mxu0 0.0
      %1695 = vmatprep.subr.mxu0 0.0
      %1696 = vmatpush1.msra.mxu0 0.0
      %1697 = vmatprep.subr.mxu0 0.0
      %1698 = vmatpush1.msra.mxu0 0.0
      %1699 = vmatprep.subr.mxu0 0.0
      %1700 = vmatpush1.msra.mxu0 0.0
      %1701 = vmatprep.subr.mxu0 0.0
      %1702 = vmatpush1.msra.mxu0 0.0
      %1703 = vmatprep.subr.mxu0 0.0
      %1704 = vmatpush1.msra.mxu0 0.0
      %1705 = vmatprep.subr.mxu0 0.0
      %1706 = vmatpush1.msra.mxu0 0.0
      %1707 = vmatprep.subr.mxu0 0.0
      %1708 = vmatpush1.msra.mxu0 0.0
      %1709 = vmatprep.mubr.f32.mxu0 0.0
      %1710 = vmatmul.mubr.f32.gmra.mrb[0].mxu0 %v1594
      %v1711 = vpop.f32.mrb[0].mxu0
      %v1712 = vadd.f32 0.0, %v1711
      %v1713 = vpop.f32.mrb[0].mxu0
      %1714 = vmatprep.mubr.f32.mxu0 0.0
      %1715 = vmatmul.mubr.f32.gmra.mrb[0].mxu0 %v1597
      %v1716 = vpop.f32.mrb[0].mxu0
      %v1717 = vadd.f32 0.0, %v1716
      %v1718 = vpop.f32.mrb[0].mxu0
      %1719 = vmatprep.mubr.f32.mxu0 0.0
      %1720 = vmatmul.mubr.f32.gmra.mrb[0].mxu0 %v1600
      %v1721 = vpop.f32.mrb[0].mxu0
      %v1722 = vadd.f32 0.0, %v1721
      %v1723 = vpop.f32.mrb[0].mxu0
      %1724 = vmatprep.mubr.f32.mxu0 0.0
      %1725 = vmatmul.mubr.f32.gmra.mrb[0].mxu0 %v1603
      %v1726 = vpop.f32.mrb[0].mxu0
      %v1727 = vadd.f32 0.0, %v1726
      %v1728 = vpop.f32.mrb[0].mxu0
      %1729 = vmatprep.mubr.f32.mxu0 0.0
      %1730 = vmatmul.mubr.f32.gmra.mrb[0].mxu0 %v1606
      %v1731 = vpop.f32.mrb[0].mxu0
      %v1732 = vadd.f32 0.0, %v1731
      %v1733 = vpop.f32.mrb[0].mxu0
      %1734 = vmatprep.mubr.f32.mxu0 0.0
      %1735 = vmatmul.mubr.f32.gmra.mrb[0].mxu0 %v1609
      %v1736 = vpop.f32.mrb[0].mxu0
      %v1737 = vadd.f32 0.0, %v1736
      %v1738 = vpop.f32.mrb[0].mxu0
      %1739 = vmatprep.mubr.f32.mxu0 0.0
      %1740 = vmatmul.mubr.f32.gmra.mrb[0].mxu0 %v1612
      %v1741 = vpop.f32.mrb[0].mxu0
      %v1742 = vadd.f32 0.0, %v1741
      %v1743 = vpop.f32.mrb[0].mxu0
      %1744 = vmatprep.mubr.f32.mxu0 0.0
      %1745 = vmatmul.mubr.f32.gmra.mrb[0].mxu0 %v1615
      %v1746 = vpop.f32.mrb[0].mxu0
      %v1747 = vadd.f32 0.0, %v1746
      %v1748 = vpop.f32.mrb[0].mxu0
      %1749 = vmatprep.mubr.f32.mxu0 0.0
      %1750 = vmatmul.mubr.f32.gmra.mrb[0].mxu0 %v1618
      %v1751 = vpop.f32.mrb[0].mxu0
      %v1752 = vadd.f32 0.0, %v1751
      %v1753 = vpop.f32.mrb[0].mxu0
      %1754 = vmatprep.mubr.f32.mxu0 0.0
      %1755 = vmatmul.mubr.f32.gmra.mrb[0].mxu0 %v1621
      %v1756 = vpop.f32.mrb[0].mxu0
      %v1757 = vadd.f32 0.0, %v1756
      %v1758 = vpop.f32.mrb[0].mxu0
      %1759 = vmatprep.mubr.f32.mxu0 0.0
      %1760 = vmatmul.mubr.f32.gmra.mrb[0].mxu0 %v1624
      %v1761 = vpop.f32.mrb[0].mxu0
      %v1762 = vadd.f32 0.0, %v1761
      %v1763 = vpop.f32.mrb[0].mxu0
      %1764 = vmatprep.mubr.f32.mxu0 0.0
      %1765 = vmatmul.mubr.f32.gmra.mrb[0].mxu0 %v1627
      %v1766 = vpop.f32.mrb[0].mxu0
      %v1767 = vadd.f32 0.0, %v1766
      %v1768 = vpop.f32.mrb[0].mxu0
      %1769 = vmatprep.mubr.f32.mxu0 0.0
      %1770 = vmatmul.mubr.f32.gmra.mrb[0].mxu0 %v1630
      %v1771 = vpop.f32.mrb[0].mxu0
      %v1772 = vadd.f32 0.0, %v1771
      %v1773 = vpop.f32.mrb[0].mxu0
      %1774 = vmatprep.mubr.f32.mxu0 0.0
      %1775 = vmatmul.mubr.f32.gmra.mrb[0].mxu0 %v1633
      %v1776 = vpop.f32.mrb[0].mxu0
      %v1777 = vadd.f32 0.0, %v1776
      %v1778 = vpop.f32.mrb[0].mxu0
      %1779 = vmatprep.mubr.f32.mxu0 0.0
      %1780 = vmatmul.mubr.f32.gmra.mrb[0].mxu0 %v1636
      %v1781 = vpop.f32.mrb[0].mxu0
      %v1782 = vadd.f32 0.0, %v1781
      %v1783 = vpop.f32.mrb[0].mxu0
      %1784 = vmatprep.mubr.f32.mxu0 0.0
      %1785 = vmatmul.mubr.f32.gmra.mrb[0].mxu0 %v1639
      %v1786 = vpop.f32.mrb[0].mxu0
      %v1787 = vadd.f32 0.0, %v1786
      %v1788 = vpop.f32.mrb[0].mxu0
      %1789 = vdwg.mxu0
      %v1790 = vsub.f32 %v1156, %v1712
      %v1791 = vsub.f32 %v1162, %v1717
      %v1792 = vsub.f32 %v1168, %v1722
      %v1793 = vsub.f32 %v1174, %v1727
      %v1794 = vsub.f32 %v1180, %v1732
      %v1795 = vsub.f32 %v1186, %v1737
      %v1796 = vsub.f32 %v1192, %v1742
      %v1797 = vsub.f32 %v1198, %v1747
      %v1798 = vsub.f32 %v1204, %v1752
      %v1799 = vsub.f32 %v1210, %v1757
      %v1800 = vsub.f32 %v1216, %v1762
      %v1801 = vsub.f32 %v1222, %v1767
      %v1802 = vsub.f32 %v1228, %v1772
      %v1803 = vsub.f32 %v1234, %v1777
      %v1804 = vsub.f32 %v1240, %v1782
      %v1805 = vsub.f32 %v1246, %v1787
      %v1806 = vmul.f32 %v1790, 1.442695
      %v1807 = vpow.pop %v1806
      %v1808 = vmul.f32 %v1791, 1.442695
      %v1809 = vpow.pop %v1808
      %v1810 = vmul.f32 %v1792, 1.442695
      %v1811 = vpow.pop %v1810
      %v1812 = vmul.f32 %v1793, 1.442695
      %v1813 = vpow.pop %v1812
      %v1814 = vmul.f32 %v1794, 1.442695
      %v1815 = vpow.pop %v1814
      %v1816 = vmul.f32 %v1795, 1.442695
      %v1817 = vpow.pop %v1816
      %v1818 = vmul.f32 %v1796, 1.442695
      %v1819 = vpow.pop %v1818
      %v1820 = vmul.f32 %v1797, 1.442695
      %v1821 = vpow.pop %v1820
      %v1822 = vmul.f32 %v1798, 1.442695
      %v1823 = vpow.pop %v1822
      %v1824 = vmul.f32 %v1799, 1.442695
      %v1825 = vpow.pop %v1824
      %v1826 = vmul.f32 %v1800, 1.442695
      %v1827 = vpow.pop %v1826
      %v1828 = vmul.f32 %v1801, 1.442695
      %v1829 = vpow.pop %v1828
      %v1830 = vmul.f32 %v1802, 1.442695
      %v1831 = vpow.pop %v1830
      %v1832 = vmul.f32 %v1803, 1.442695
      %v1833 = vpow.pop %v1832
      %v1834 = vmul.f32 %v1804, 1.442695
      %v1835 = vpow.pop %v1834
      %v1836 = vmul.f32 %v1805, 1.442695
      %v1837 = vpow.pop %v1836
      %v1838 = vld [vmem:[%s8] sm:$0xff]
      %v1839 = vld [vmem:[%s8 + $0x8] sm:$0xff]
      %v1840 = vld [vmem:[%s8 + $0x10] sm:$0xff]
      %v1841 = vld [vmem:[%s8 + $0x18] sm:$0xff]
      %v1842 = vld [vmem:[%s8 + $0x20] sm:$0xff]
      %v1843 = vld [vmem:[%s8 + $0x28] sm:$0xff]
      %v1844 = vld [vmem:[%s8 + $0x30] sm:$0xff]
      %v1845 = vld [vmem:[%s8 + $0x38] sm:$0xff]
      %v1846 = vld [vmem:[%s8 + $0x40] sm:$0xf]
      %vm1847 = vcmask 556032
      %v1849 = vsel %vm1847, %v1807, 0
      %v1852 = vsel %vm1847, %v1809, 0
      %v1855 = vsel %vm1847, %v1811, 0
      %v1858 = vsel %vm1847, %v1813, 0
      %v1861 = vsel %vm1847, %v1815, 0
      %v1864 = vsel %vm1847, %v1817, 0
      %v1867 = vsel %vm1847, %v1819, 0
      %v1870 = vsel %vm1847, %v1821, 0
      %v1873 = vsel %vm1847, %v1823, 0
      %v1876 = vsel %vm1847, %v1825, 0
      %v1879 = vsel %vm1847, %v1827, 0
      %v1882 = vsel %vm1847, %v1829, 0
      %v1885 = vsel %vm1847, %v1831, 0
      %v1888 = vsel %vm1847, %v1833, 0
      %v1891 = vsel %vm1847, %v1835, 0
      %v1894 = vsel %vm1847, %v1837, 0
      %v1897 = vsel %vm1641, %v1846, 0
      %1899 = vmatprep.subr.mxu0 0.0
      %1900 = vmatpush1.msra.mxu0 %v1838
      %1901 = vmatprep.subr.mxu0 0.0
      %1902 = vmatpush1.msra.mxu0 %v1839
      %1903 = vmatprep.subr.mxu0 0.0
      %1904 = vmatpush1.msra.mxu0 %v1840
      %1905 = vmatprep.subr.mxu0 0.0
      %1906 = vmatpush1.msra.mxu0 %v1841
      %1907 = vmatprep.subr.mxu0 0.0
      %1908 = vmatpush1.msra.mxu0 %v1842
      %1909 = vmatprep.subr.mxu0 0.0
      %1910 = vmatpush1.msra.mxu0 %v1843
      %1911 = vmatprep.subr.mxu0 0.0
      %1912 = vmatpush1.msra.mxu0 %v1844
      %1913 = vmatprep.subr.mxu0 0.0
      %1914 = vmatpush1.msra.mxu0 %v1845
      %1915 = vmatprep.subr.mxu0 0.0
      %1916 = vmatpush1.msra.mxu0 %v1897
      %1917 = vmatprep.subr.mxu0 0.0
      %1918 = vmatpush1.msra.mxu0 0.0
      %1919 = vmatprep.subr.mxu0 0.0
      %1920 = vmatpush1.msra.mxu0 0.0
      %1921 = vmatprep.subr.mxu0 0.0
      %1922 = vmatpush1.msra.mxu0 0.0
      %1923 = vmatprep.subr.mxu0 0.0
      %1924 = vmatpush1.msra.mxu0 0.0
      %1925 = vmatprep.subr.mxu0 0.0
      %1926 = vmatpush1.msra.mxu0 0.0
      %1927 = vmatprep.subr.mxu0 0.0
      %1928 = vmatpush1.msra.mxu0 0.0
      %1929 = vmatprep.subr.mxu0 0.0
      %1930 = vmatpush1.msra.mxu0 0.0
      %1931 = vmatprep.subr.mxu0 0.0
      %1932 = vmatpush1.msra.mxu0 0.0
      %1933 = vmatprep.subr.mxu0 0.0
      %1934 = vmatpush1.msra.mxu0 0.0
      %1935 = vmatprep.subr.mxu0 0.0
      %1936 = vmatpush1.msra.mxu0 0.0
      %1937 = vmatprep.subr.mxu0 0.0
      %1938 = vmatpush1.msra.mxu0 0.0
      %1939 = vmatprep.subr.mxu0 0.0
      %1940 = vmatpush1.msra.mxu0 0.0
      %1941 = vmatprep.subr.mxu0 0.0
      %1942 = vmatpush1.msra.mxu0 0.0
      %1943 = vmatprep.subr.mxu0 0.0
      %1944 = vmatpush1.msra.mxu0 0.0
      %1945 = vmatprep.subr.mxu0 0.0
      %1946 = vmatpush1.msra.mxu0 0.0
      %1947 = vmatprep.subr.mxu0 0.0
      %1948 = vmatpush1.msra.mxu0 0.0
      %1949 = vmatprep.subr.mxu0 0.0
      %1950 = vmatpush1.msra.mxu0 0.0
      %1951 = vmatprep.subr.mxu0 0.0
      %1952 = vmatpush1.msra.mxu0 0.0
      %1953 = vmatprep.subr.mxu0 0.0
      %1954 = vmatpush1.msra.mxu0 0.0
      %1955 = vmatprep.subr.mxu0 0.0
      %1956 = vmatpush1.msra.mxu0 0.0
      %1957 = vmatprep.subr.mxu0 0.0
      %1958 = vmatpush1.msra.mxu0 0.0
      %1959 = vmatprep.subr.mxu0 0.0
      %1960 = vmatpush1.msra.mxu0 0.0
      %1961 = vmatprep.subr.mxu0 0.0
      %1962 = vmatpush1.msra.mxu0 0.0
      %1963 = vmatprep.mubr.f32.mxu0 0.0
      %1964 = vmatmul.mubr.f32.gmra.mrb[0].mxu0 %v1849
      %v1965 = vpop.f32.mrb[0].mxu0
      %v1966 = vadd.f32 0.0, %v1965
      %v1967 = vpop.f32.mrb[0].mxu0
      %1968 = vmatprep.mubr.f32.mxu0 0.0
      %1969 = vmatmul.mubr.f32.gmra.mrb[0].mxu0 %v1852
      %v1970 = vpop.f32.mrb[0].mxu0
      %v1971 = vadd.f32 0.0, %v1970
      %v1972 = vpop.f32.mrb[0].mxu0
      %1973 = vmatprep.mubr.f32.mxu0 0.0
      %1974 = vmatmul.mubr.f32.gmra.mrb[0].mxu0 %v1855
      %v1975 = vpop.f32.mrb[0].mxu0
      %v1976 = vadd.f32 0.0, %v1975
      %v1977 = vpop.f32.mrb[0].mxu0
      %1978 = vmatprep.mubr.f32.mxu0 0.0
      %1979 = vmatmul.mubr.f32.gmra.mrb[0].mxu0 %v1858
      %v1980 = vpop.f32.mrb[0].mxu0
      %v1981 = vadd.f32 0.0, %v1980
      %v1982 = vpop.f32.mrb[0].mxu0
      %1983 = vmatprep.mubr.f32.mxu0 0.0
      %1984 = vmatmul.mubr.f32.gmra.mrb[0].mxu0 %v1861
      %v1985 = vpop.f32.mrb[0].mxu0
      %v1986 = vadd.f32 0.0, %v1985
      %v1987 = vpop.f32.mrb[0].mxu0
      %1988 = vmatprep.mubr.f32.mxu0 0.0
      %1989 = vmatmul.mubr.f32.gmra.mrb[0].mxu0 %v1864
      %v1990 = vpop.f32.mrb[0].mxu0
      %v1991 = vadd.f32 0.0, %v1990
      %v1992 = vpop.f32.mrb[0].mxu0
      %1993 = vmatprep.mubr.f32.mxu0 0.0
      %1994 = vmatmul.mubr.f32.gmra.mrb[0].mxu0 %v1867
      %v1995 = vpop.f32.mrb[0].mxu0
      %v1996 = vadd.f32 0.0, %v1995
      %v1997 = vpop.f32.mrb[0].mxu0
      %1998 = vmatprep.mubr.f32.mxu0 0.0
      %1999 = vmatmul.mubr.f32.gmra.mrb[0].mxu0 %v1870
      %v2000 = vpop.f32.mrb[0].mxu0
      %v2001 = vadd.f32 0.0, %v2000
      %v2002 = vpop.f32.mrb[0].mxu0
      %2003 = vmatprep.mubr.f32.mxu0 0.0
      %2004 = vmatmul.mubr.f32.gmra.mrb[0].mxu0 %v1873
      %v2005 = vpop.f32.mrb[0].mxu0
      %v2006 = vadd.f32 0.0, %v2005
      %v2007 = vpop.f32.mrb[0].mxu0
      %2008 = vmatprep.mubr.f32.mxu0 0.0
      %2009 = vmatmul.mubr.f32.gmra.mrb[0].mxu0 %v1876
      %v2010 = vpop.f32.mrb[0].mxu0
      %v2011 = vadd.f32 0.0, %v2010
      %v2012 = vpop.f32.mrb[0].mxu0
      %2013 = vmatprep.mubr.f32.mxu0 0.0
      %2014 = vmatmul.mubr.f32.gmra.mrb[0].mxu0 %v1879
      %v2015 = vpop.f32.mrb[0].mxu0
      %v2016 = vadd.f32 0.0, %v2015
      %v2017 = vpop.f32.mrb[0].mxu0
      %2018 = vmatprep.mubr.f32.mxu0 0.0
      %2019 = vmatmul.mubr.f32.gmra.mrb[0].mxu0 %v1882
      %v2020 = vpop.f32.mrb[0].mxu0
      %v2021 = vadd.f32 0.0, %v2020
      %v2022 = vpop.f32.mrb[0].mxu0
      %2023 = vmatprep.mubr.f32.mxu0 0.0
      %2024 = vmatmul.mubr.f32.gmra.mrb[0].mxu0 %v1885
      %v2025 = vpop.f32.mrb[0].mxu0
      %v2026 = vadd.f32 0.0, %v2025
      %v2027 = vpop.f32.mrb[0].mxu0
      %2028 = vmatprep.mubr.f32.mxu0 0.0
      %2029 = vmatmul.mubr.f32.gmra.mrb[0].mxu0 %v1888
      %v2030 = vpop.f32.mrb[0].mxu0
      %v2031 = vadd.f32 0.0, %v2030
      %v2032 = vpop.f32.mrb[0].mxu0
      %2033 = vmatprep.mubr.f32.mxu0 0.0
      %2034 = vmatmul.mubr.f32.gmra.mrb[0].mxu0 %v1891
      %v2035 = vpop.f32.mrb[0].mxu0
      %v2036 = vadd.f32 0.0, %v2035
      %v2037 = vpop.f32.mrb[0].mxu0
      %2038 = vmatprep.mubr.f32.mxu0 0.0
      %2039 = vmatmul.mubr.f32.gmra.mrb[0].mxu0 %v1894
      %v2040 = vpop.f32.mrb[0].mxu0
      %v2041 = vadd.f32 0.0, %v2040
      %v2042 = vpop.f32.mrb[0].mxu0
      %2043 = vdwg.mxu0
      %2060 = vrot.lane.b32.xlu0 %v1966, 124
      %v2061 = vpop.permute.xlu0 %2060
      %2062 = vrot.lane.b32.xlu0 %v1971, 124
      %v2063 = vpop.permute.xlu0 %2062
      %2064 = vrot.lane.b32.xlu0 %v1976, 124
      %v2065 = vpop.permute.xlu0 %2064
      %2066 = vrot.lane.b32.xlu0 %v1981, 124
      %v2067 = vpop.permute.xlu0 %2066
      %2068 = vrot.lane.b32.xlu0 %v1986, 124
      %v2069 = vpop.permute.xlu0 %2068
      %2070 = vrot.lane.b32.xlu0 %v1991, 124
      %v2071 = vpop.permute.xlu0 %2070
      %2072 = vrot.lane.b32.xlu0 %v1996, 124
      %v2073 = vpop.permute.xlu0 %2072
      %2074 = vrot.lane.b32.xlu0 %v2001, 124
      %v2075 = vpop.permute.xlu0 %2074
      %2076 = vrot.lane.b32.xlu0 %v2006, 124
      %v2077 = vpop.permute.xlu0 %2076
      %2078 = vrot.lane.b32.xlu0 %v2011, 124
      %v2079 = vpop.permute.xlu0 %2078
      %2080 = vrot.lane.b32.xlu0 %v2016, 124
      %v2081 = vpop.permute.xlu0 %2080
      %2082 = vrot.lane.b32.xlu0 %v2021, 124
      %v2083 = vpop.permute.xlu0 %2082
      %2084 = vrot.lane.b32.xlu0 %v2026, 124
      %v2085 = vpop.permute.xlu0 %2084
      %2086 = vrot.lane.b32.xlu0 %v2031, 124
      %v2087 = vpop.permute.xlu0 %2086
      %2088 = vrot.lane.b32.xlu0 %v2036, 124
      %v2089 = vpop.permute.xlu0 %2088
      %2090 = vrot.lane.b32.xlu0 %v2041, 124
      %v2091 = vpop.permute.xlu0 %2090
      %v2108 = vrcp.pop %v2061
      %v2109 = vmul.f32 %v1966, %v2108
      %v2110 = vrcp.pop %v2063
      %v2111 = vmul.f32 %v1971, %v2110
      %v2112 = vrcp.pop %v2065
      %v2113 = vmul.f32 %v1976, %v2112
      %v2114 = vrcp.pop %v2067
      %v2115 = vmul.f32 %v1981, %v2114
      %v2116 = vrcp.pop %v2069
      %v2117 = vmul.f32 %v1986, %v2116
      %v2118 = vrcp.pop %v2071
      %v2119 = vmul.f32 %v1991, %v2118
      %v2120 = vrcp.pop %v2073
      %v2121 = vmul.f32 %v1996, %v2120
      %v2122 = vrcp.pop %v2075
      %v2123 = vmul.f32 %v2001, %v2122
      %v2124 = vrcp.pop %v2077
      %v2125 = vmul.f32 %v2006, %v2124
      %v2126 = vrcp.pop %v2079
      %v2127 = vmul.f32 %v2011, %v2126
      %v2128 = vrcp.pop %v2081
      %v2129 = vmul.f32 %v2016, %v2128
      %v2130 = vrcp.pop %v2083
      %v2131 = vmul.f32 %v2021, %v2130
      %v2132 = vrcp.pop %v2085
      %v2133 = vmul.f32 %v2026, %v2132
      %v2134 = vrcp.pop %v2087
      %v2135 = vmul.f32 %v2031, %v2134
      %v2136 = vrcp.pop %v2089
      %v2137 = vmul.f32 %v2036, %v2136
      %v2138 = vrcp.pop %v2091
      %v2139 = vmul.f32 %v2041, %v2138
      %2156 = vrot.lane.b32.xlu0 %v2109, 2
      %v2157 = vpop.permute.xlu0 %2156
      %2158 = vrot.lane.b32.xlu0 %v2111, 2
      %v2159 = vpop.permute.xlu0 %2158
      %2160 = vrot.lane.b32.xlu0 %v2113, 2
      %v2161 = vpop.permute.xlu0 %2160
      %2162 = vrot.lane.b32.xlu0 %v2115, 2
      %v2163 = vpop.permute.xlu0 %2162
      %2164 = vrot.lane.b32.xlu0 %v2117, 2
      %v2165 = vpop.permute.xlu0 %2164
      %2166 = vrot.lane.b32.xlu0 %v2119, 2
      %v2167 = vpop.permute.xlu0 %2166
      %2168 = vrot.lane.b32.xlu0 %v2121, 2
      %v2169 = vpop.permute.xlu0 %2168
      %2170 = vrot.lane.b32.xlu0 %v2123, 2
      %v2171 = vpop.permute.xlu0 %2170
      %2172 = vrot.lane.b32.xlu0 %v2125, 2
      %v2173 = vpop.permute.xlu0 %2172
      %2174 = vrot.lane.b32.xlu0 %v2127, 2
      %v2175 = vpop.permute.xlu0 %2174
      %2176 = vrot.lane.b32.xlu0 %v2129, 2
      %v2177 = vpop.permute.xlu0 %2176
      %2178 = vrot.lane.b32.xlu0 %v2131, 2
      %v2179 = vpop.permute.xlu0 %2178
      %2180 = vrot.lane.b32.xlu0 %v2133, 2
      %v2181 = vpop.permute.xlu0 %2180
      %2182 = vrot.lane.b32.xlu0 %v2135, 2
      %v2183 = vpop.permute.xlu0 %2182
      %2184 = vrot.lane.b32.xlu0 %v2137, 2
      %v2185 = vpop.permute.xlu0 %2184
      %2186 = vrot.lane.b32.xlu0 %v2139, 2
      %v2187 = vpop.permute.xlu0 %2186
      %v2204 = vsub.f32 %v2109, %v2157
      %v2205 = vsub.f32 %v2111, %v2159
      %v2206 = vsub.f32 %v2113, %v2161
      %v2207 = vsub.f32 %v2115, %v2163
      %v2208 = vsub.f32 %v2117, %v2165
      %v2209 = vsub.f32 %v2119, %v2167
      %v2210 = vsub.f32 %v2121, %v2169
      %v2211 = vsub.f32 %v2123, %v2171
      %v2212 = vsub.f32 %v2125, %v2173
      %v2213 = vsub.f32 %v2127, %v2175
      %v2214 = vsub.f32 %v2129, %v2177
      %v2215 = vsub.f32 %v2131, %v2179
      %v2216 = vsub.f32 %v2133, %v2181
      %v2217 = vsub.f32 %v2135, %v2183
      %v2218 = vsub.f32 %v2137, %v2185
      %v2219 = vsub.f32 %v2139, %v2187
      %v2220 = vmul.f32 %v2204, 0.5
      %v2221 = vmul.f32 %v2205, 0.5
      %v2222 = vmul.f32 %v2206, 0.5
      %v2223 = vmul.f32 %v2207, 0.5
      %v2224 = vmul.f32 %v2208, 0.5
      %v2225 = vmul.f32 %v2209, 0.5
      %v2226 = vmul.f32 %v2210, 0.5
      %v2227 = vmul.f32 %v2211, 0.5
      %v2228 = vmul.f32 %v2212, 0.5
      %v2229 = vmul.f32 %v2213, 0.5
      %v2230 = vmul.f32 %v2214, 0.5
      %v2231 = vmul.f32 %v2215, 0.5
      %v2232 = vmul.f32 %v2216, 0.5
      %v2233 = vmul.f32 %v2217, 0.5
      %v2234 = vmul.f32 %v2218, 0.5
      %v2235 = vmul.f32 %v2219, 0.5
      %2252 = vrot.lane.b32.xlu0 %v2220, 30
      %v2253 = vpop.permute.xlu0 %2252
      %2254 = vrot.lane.b32.xlu0 %v2221, 30
      %v2255 = vpop.permute.xlu0 %2254
      %2256 = vrot.lane.b32.xlu0 %v2222, 30
      %v2257 = vpop.permute.xlu0 %2256
      %2258 = vrot.lane.b32.xlu0 %v2223, 30
      %v2259 = vpop.permute.xlu0 %2258
      %2260 = vrot.lane.b32.xlu0 %v2224, 30
      %v2261 = vpop.permute.xlu0 %2260
      %2262 = vrot.lane.b32.xlu0 %v2225, 30
      %v2263 = vpop.permute.xlu0 %2262
      %2264 = vrot.lane.b32.xlu0 %v2226, 30
      %v2265 = vpop.permute.xlu0 %2264
      %2266 = vrot.lane.b32.xlu0 %v2227, 30
      %v2267 = vpop.permute.xlu0 %2266
      %2268 = vrot.lane.b32.xlu0 %v2228, 30
      %v2269 = vpop.permute.xlu0 %2268
      %2270 = vrot.lane.b32.xlu0 %v2229, 30
      %v2271 = vpop.permute.xlu0 %2270
      %2272 = vrot.lane.b32.xlu0 %v2230, 30
      %v2273 = vpop.permute.xlu0 %2272
      %2274 = vrot.lane.b32.xlu0 %v2231, 30
      %v2275 = vpop.permute.xlu0 %2274
      %2276 = vrot.lane.b32.xlu0 %v2232, 30
      %v2277 = vpop.permute.xlu0 %2276
      %2278 = vrot.lane.b32.xlu0 %v2233, 30
      %v2279 = vpop.permute.xlu0 %2278
      %2280 = vrot.lane.b32.xlu0 %v2234, 30
      %v2281 = vpop.permute.xlu0 %2280
      %2282 = vrot.lane.b32.xlu0 %v2235, 30
      %v2283 = vpop.permute.xlu0 %2282
      %v2300 = vadd.f32 %v344, %v2253
      %v2301 = vadd.f32 %v345, %v2255
      %v2302 = vadd.f32 %v346, %v2257
      %v2303 = vadd.f32 %v347, %v2259
      %v2304 = vadd.f32 %v348, %v2261
      %v2305 = vadd.f32 %v349, %v2263
      %v2306 = vadd.f32 %v350, %v2265
      %v2307 = vadd.f32 %v351, %v2267
      %v2308 = vadd.f32 %v352, %v2269
      %v2309 = vadd.f32 %v353, %v2271
      %v2310 = vadd.f32 %v354, %v2273
      %v2311 = vadd.f32 %v355, %v2275
      %v2312 = vadd.f32 %v356, %v2277
      %v2313 = vadd.f32 %v357, %v2279
      %v2314 = vadd.f32 %v358, %v2281
      %v2315 = vadd.f32 %v359, %v2283
      %2316 = vset.pattern.permute.xlu0 34
      %2317 = vperm.xlu0 %2316, %v344
      %v2318 = vpop.permute.xlu0 %2317
      %2320 = vset.pattern.permute.xlu0 34
      %2321 = vperm.xlu0 %2320, %v345
      %v2322 = vpop.permute.xlu0 %2321
      %2324 = vset.pattern.permute.xlu0 34
      %2325 = vperm.xlu0 %2324, %v346
      %v2326 = vpop.permute.xlu0 %2325
      %2328 = vset.pattern.permute.xlu0 34
      %2329 = vperm.xlu0 %2328, %v347
      %v2330 = vpop.permute.xlu0 %2329
      %2332 = vset.pattern.permute.xlu0 34
      %2333 = vperm.xlu0 %2332, %v348
      %v2334 = vpop.permute.xlu0 %2333
      %2336 = vset.pattern.permute.xlu0 34
      %2337 = vperm.xlu0 %2336, %v349
      %v2338 = vpop.permute.xlu0 %2337
      %2340 = vset.pattern.permute.xlu0 34
      %2341 = vperm.xlu0 %2340, %v350
      %v2342 = vpop.permute.xlu0 %2341
      %2344 = vset.pattern.permute.xlu0 34
      %2345 = vperm.xlu0 %2344, %v351
      %v2346 = vpop.permute.xlu0 %2345
      %2348 = vset.pattern.permute.xlu0 34
      %2349 = vperm.xlu0 %2348, %v352
      %v2350 = vpop.permute.xlu0 %2349
      %2352 = vset.pattern.permute.xlu0 34
      %2353 = vperm.xlu0 %2352, %v353
      %v2354 = vpop.permute.xlu0 %2353
      %2356 = vset.pattern.permute.xlu0 34
      %2357 = vperm.xlu0 %2356, %v354
      %v2358 = vpop.permute.xlu0 %2357
      %2360 = vset.pattern.permute.xlu0 34
      %2361 = vperm.xlu0 %2360, %v355
      %v2362 = vpop.permute.xlu0 %2361
      %2364 = vset.pattern.permute.xlu0 34
      %2365 = vperm.xlu0 %2364, %v356
      %v2366 = vpop.permute.xlu0 %2365
      %2368 = vset.pattern.permute.xlu0 34
      %2369 = vperm.xlu0 %2368, %v357
      %v2370 = vpop.permute.xlu0 %2369
      %2372 = vset.pattern.permute.xlu0 34
      %2373 = vperm.xlu0 %2372, %v358
      %v2374 = vpop.permute.xlu0 %2373
      %2376 = vset.pattern.permute.xlu0 34
      %2377 = vperm.xlu0 %2376, %v359
      %v2378 = vpop.permute.xlu0 %2377
      %v2380 = vmul.f32 %v2300, %v2318
      %v2381 = vmul.f32 %v2301, %v2322
      %v2382 = vmul.f32 %v2302, %v2326
      %v2383 = vmul.f32 %v2303, %v2330
      %v2384 = vmul.f32 %v2304, %v2334
      %v2385 = vmul.f32 %v2305, %v2338
      %v2386 = vmul.f32 %v2306, %v2342
      %v2387 = vmul.f32 %v2307, %v2346
      %v2388 = vmul.f32 %v2308, %v2350
      %v2389 = vmul.f32 %v2309, %v2354
      %v2390 = vmul.f32 %v2310, %v2358
      %v2391 = vmul.f32 %v2311, %v2362
      %v2392 = vmul.f32 %v2312, %v2366
      %v2393 = vmul.f32 %v2313, %v2370
      %v2394 = vmul.f32 %v2314, %v2374
      %v2395 = vmul.f32 %v2315, %v2378
      %2412 = vrot.lane.b32.xlu0 %v2380, 96
      %v2413 = vpop.permute.xlu0 %2412
      %2414 = vrot.lane.b32.xlu0 %v2381, 96
      %v2415 = vpop.permute.xlu0 %2414
      %2416 = vrot.lane.b32.xlu0 %v2382, 96
      %v2417 = vpop.permute.xlu0 %2416
      %2418 = vrot.lane.b32.xlu0 %v2383, 96
      %v2419 = vpop.permute.xlu0 %2418
      %2420 = vrot.lane.b32.xlu0 %v2384, 96
      %v2421 = vpop.permute.xlu0 %2420
      %2422 = vrot.lane.b32.xlu0 %v2385, 96
      %v2423 = vpop.permute.xlu0 %2422
      %2424 = vrot.lane.b32.xlu0 %v2386, 96
      %v2425 = vpop.permute.xlu0 %2424
      %2426 = vrot.lane.b32.xlu0 %v2387, 96
      %v2427 = vpop.permute.xlu0 %2426
      %2428 = vrot.lane.b32.xlu0 %v2388, 96
      %v2429 = vpop.permute.xlu0 %2428
      %2430 = vrot.lane.b32.xlu0 %v2389, 96
      %v2431 = vpop.permute.xlu0 %2430
      %2432 = vrot.lane.b32.xlu0 %v2390, 96
      %v2433 = vpop.permute.xlu0 %2432
      %2434 = vrot.lane.b32.xlu0 %v2391, 96
      %v2435 = vpop.permute.xlu0 %2434
      %2436 = vrot.lane.b32.xlu0 %v2392, 96
      %v2437 = vpop.permute.xlu0 %2436
      %2438 = vrot.lane.b32.xlu0 %v2393, 96
      %v2439 = vpop.permute.xlu0 %2438
      %2440 = vrot.lane.b32.xlu0 %v2394, 96
      %v2441 = vpop.permute.xlu0 %2440
      %2442 = vrot.lane.b32.xlu0 %v2395, 96
      %v2443 = vpop.permute.xlu0 %2442
      %2460 = vst.msk [vmem:[%s341] sm:$0xff] %vm1557, %v2413
      %2461 = vst.msk [vmem:[%s341 + $0x8] sm:$0xff] %vm1557, %v2415
      %2462 = vst.msk [vmem:[%s341 + $0x10] sm:$0xff] %vm1557, %v2417
      %2463 = vst.msk [vmem:[%s341 + $0x18] sm:$0xff] %vm1557, %v2419
      %2464 = vst.msk [vmem:[%s341 + $0x20] sm:$0xff] %vm1557, %v2421
      %2465 = vst.msk [vmem:[%s341 + $0x28] sm:$0xff] %vm1557, %v2423
      %2466 = vst.msk [vmem:[%s341 + $0x30] sm:$0xff] %vm1557, %v2425
      %2467 = vst.msk [vmem:[%s341 + $0x38] sm:$0xff] %vm1557, %v2427
      %2468 = vst.msk [vmem:[%s341 + $0x40] sm:$0xff] %vm1557, %v2429
      %2469 = vst.msk [vmem:[%s341 + $0x48] sm:$0xff] %vm1557, %v2431
      %2470 = vst.msk [vmem:[%s341 + $0x50] sm:$0xff] %vm1557, %v2433
      %2471 = vst.msk [vmem:[%s341 + $0x58] sm:$0xff] %vm1557, %v2435
      %2472 = vst.msk [vmem:[%s341 + $0x60] sm:$0xff] %vm1557, %v2437
      %2473 = vst.msk [vmem:[%s341 + $0x68] sm:$0xff] %vm1557, %v2439
      %2474 = vst.msk [vmem:[%s341 + $0x70] sm:$0xff] %vm1557, %v2441
      %2475 = vst.msk [vmem:[%s341 + $0x78] sm:$0xff] %vm1557, %v2443
      %2476 = vrot.lane.b32.xlu0 %v2109, 126
      %v2477 = vpop.permute.xlu0 %2476
      %2478 = vrot.lane.b32.xlu0 %v2111, 126
      %v2479 = vpop.permute.xlu0 %2478
      %2480 = vrot.lane.b32.xlu0 %v2113, 126
      %v2481 = vpop.permute.xlu0 %2480
      %2482 = vrot.lane.b32.xlu0 %v2115, 126
      %v2483 = vpop.permute.xlu0 %2482
      %2484 = vrot.lane.b32.xlu0 %v2117, 126
      %v2485 = vpop.permute.xlu0 %2484
      %2486 = vrot.lane.b32.xlu0 %v2119, 126
      %v2487 = vpop.permute.xlu0 %2486
      %2488 = vrot.lane.b32.xlu0 %v2121, 126
      %v2489 = vpop.permute.xlu0 %2488
      %2490 = vrot.lane.b32.xlu0 %v2123, 126
      %v2491 = vpop.permute.xlu0 %2490
      %2492 = vrot.lane.b32.xlu0 %v2125, 126
      %v2493 = vpop.permute.xlu0 %2492
      %2494 = vrot.lane.b32.xlu0 %v2127, 126
      %v2495 = vpop.permute.xlu0 %2494
      %2496 = vrot.lane.b32.xlu0 %v2129, 126
      %v2497 = vpop.permute.xlu0 %2496
      %2498 = vrot.lane.b32.xlu0 %v2131, 126
      %v2499 = vpop.permute.xlu0 %2498
      %2500 = vrot.lane.b32.xlu0 %v2133, 126
      %v2501 = vpop.permute.xlu0 %2500
      %2502 = vrot.lane.b32.xlu0 %v2135, 126
      %v2503 = vpop.permute.xlu0 %2502
      %2504 = vrot.lane.b32.xlu0 %v2137, 126
      %v2505 = vpop.permute.xlu0 %2504
      %2506 = vrot.lane.b32.xlu0 %v2139, 126
      %v2507 = vpop.permute.xlu0 %2506
      %v2524 = vadd.f32 %v2109, %v2477
      %v2525 = vadd.f32 %v2111, %v2479
      %v2526 = vadd.f32 %v2113, %v2481
      %v2527 = vadd.f32 %v2115, %v2483
      %v2528 = vadd.f32 %v2117, %v2485
      %v2529 = vadd.f32 %v2119, %v2487
      %v2530 = vadd.f32 %v2121, %v2489
      %v2531 = vadd.f32 %v2123, %v2491
      %v2532 = vadd.f32 %v2125, %v2493
      %v2533 = vadd.f32 %v2127, %v2495
      %v2534 = vadd.f32 %v2129, %v2497
      %v2535 = vadd.f32 %v2131, %v2499
      %v2536 = vadd.f32 %v2133, %v2501
      %v2537 = vadd.f32 %v2135, %v2503
      %v2538 = vadd.f32 %v2137, %v2505
      %v2539 = vadd.f32 %v2139, %v2507
      %v2540 = vmul.f32 %v2524, %v2318
      %v2541 = vmul.f32 %v2525, %v2322
      %v2542 = vmul.f32 %v2526, %v2326
      %v2543 = vmul.f32 %v2527, %v2330
      %v2544 = vmul.f32 %v2528, %v2334
      %v2545 = vmul.f32 %v2529, %v2338
      %v2546 = vmul.f32 %v2530, %v2342
      %v2547 = vmul.f32 %v2531, %v2346
      %v2548 = vmul.f32 %v2532, %v2350
      %v2549 = vmul.f32 %v2533, %v2354
      %v2550 = vmul.f32 %v2534, %v2358
      %v2551 = vmul.f32 %v2535, %v2362
      %v2552 = vmul.f32 %v2536, %v2366
      %v2553 = vmul.f32 %v2537, %v2370
      %v2554 = vmul.f32 %v2538, %v2374
      %v2555 = vmul.f32 %v2539, %v2378
      %2572 = vrot.lane.b32.xlu0 %v2540, 2
      %v2573 = vpop.permute.xlu0 %2572
      %2574 = vrot.lane.b32.xlu0 %v2541, 2
      %v2575 = vpop.permute.xlu0 %2574
      %2576 = vrot.lane.b32.xlu0 %v2542, 2
      %v2577 = vpop.permute.xlu0 %2576
      %2578 = vrot.lane.b32.xlu0 %v2543, 2
      %v2579 = vpop.permute.xlu0 %2578
      %2580 = vrot.lane.b32.xlu0 %v2544, 2
      %v2581 = vpop.permute.xlu0 %2580
      %2582 = vrot.lane.b32.xlu0 %v2545, 2
      %v2583 = vpop.permute.xlu0 %2582
      %2584 = vrot.lane.b32.xlu0 %v2546, 2
      %v2585 = vpop.permute.xlu0 %2584
      %2586 = vrot.lane.b32.xlu0 %v2547, 2
      %v2587 = vpop.permute.xlu0 %2586
      %2588 = vrot.lane.b32.xlu0 %v2548, 2
      %v2589 = vpop.permute.xlu0 %2588
      %2590 = vrot.lane.b32.xlu0 %v2549, 2
      %v2591 = vpop.permute.xlu0 %2590
      %2592 = vrot.lane.b32.xlu0 %v2550, 2
      %v2593 = vpop.permute.xlu0 %2592
      %2594 = vrot.lane.b32.xlu0 %v2551, 2
      %v2595 = vpop.permute.xlu0 %2594
      %2596 = vrot.lane.b32.xlu0 %v2552, 2
      %v2597 = vpop.permute.xlu0 %2596
      %2598 = vrot.lane.b32.xlu0 %v2553, 2
      %v2599 = vpop.permute.xlu0 %2598
      %2600 = vrot.lane.b32.xlu0 %v2554, 2
      %v2601 = vpop.permute.xlu0 %2600
      %2602 = vrot.lane.b32.xlu0 %v2555, 2
      %v2603 = vpop.permute.xlu0 %2602
      %vm2620 = vcmask 31760
      %2621 = vst.msk [vmem:[%s341] sm:$0xff] %vm2620, %v2573
      %2622 = vst.msk [vmem:[%s341 + $0x8] sm:$0xff] %vm2620, %v2575
      %2623 = vst.msk [vmem:[%s341 + $0x10] sm:$0xff] %vm2620, %v2577
      %2624 = vst.msk [vmem:[%s341 + $0x18] sm:$0xff] %vm2620, %v2579
      %2625 = vst.msk [vmem:[%s341 + $0x20] sm:$0xff] %vm2620, %v2581
      %2626 = vst.msk [vmem:[%s341 + $0x28] sm:$0xff] %vm2620, %v2583
      %2627 = vst.msk [vmem:[%s341 + $0x30] sm:$0xff] %vm2620, %v2585
      %2628 = vst.msk [vmem:[%s341 + $0x38] sm:$0xff] %vm2620, %v2587
      %2629 = vst.msk [vmem:[%s341 + $0x40] sm:$0xff] %vm2620, %v2589
      %2630 = vst.msk [vmem:[%s341 + $0x48] sm:$0xff] %vm2620, %v2591
      %2631 = vst.msk [vmem:[%s341 + $0x50] sm:$0xff] %vm2620, %v2593
      %2632 = vst.msk [vmem:[%s341 + $0x58] sm:$0xff] %vm2620, %v2595
      %2633 = vst.msk [vmem:[%s341 + $0x60] sm:$0xff] %vm2620, %v2597
      %2634 = vst.msk [vmem:[%s341 + $0x68] sm:$0xff] %vm2620, %v2599
      %2635 = vst.msk [vmem:[%s341 + $0x70] sm:$0xff] %vm2620, %v2601
      %2636 = vst.msk [vmem:[%s341 + $0x78] sm:$0xff] %vm2620, %v2603
      %vm2637 = vcmask 39968
      %2638 = vst.msk [vmem:[%s341] sm:$0xff] %vm2637, 1.0
      %2639 = vst.msk [vmem:[%s341 + $0x8] sm:$0xff] %vm2637, 1.0
      %2640 = vst.msk [vmem:[%s341 + $0x10] sm:$0xff] %vm2637, 1.0
      %2641 = vst.msk [vmem:[%s341 + $0x18] sm:$0xff] %vm2637, 1.0
      %2642 = vst.msk [vmem:[%s341 + $0x20] sm:$0xff] %vm2637, 1.0
      %2643 = vst.msk [vmem:[%s341 + $0x28] sm:$0xff] %vm2637, 1.0
      %2644 = vst.msk [vmem:[%s341 + $0x30] sm:$0xff] %vm2637, 1.0
      %2645 = vst.msk [vmem:[%s341 + $0x38] sm:$0xff] %vm2637, 1.0
      %2646 = vst.msk [vmem:[%s341 + $0x40] sm:$0xff] %vm2637, 1.0
      %2647 = vst.msk [vmem:[%s341 + $0x48] sm:$0xff] %vm2637, 1.0
      %2648 = vst.msk [vmem:[%s341 + $0x50] sm:$0xff] %vm2637, 1.0
      %2649 = vst.msk [vmem:[%s341 + $0x58] sm:$0xff] %vm2637, 1.0
      %2650 = vst.msk [vmem:[%s341 + $0x60] sm:$0xff] %vm2637, 1.0
      %2651 = vst.msk [vmem:[%s341 + $0x68] sm:$0xff] %vm2637, 1.0
      %2652 = vst.msk [vmem:[%s341 + $0x70] sm:$0xff] %vm2637, 1.0
      %2653 = vst.msk [vmem:[%s341 + $0x78] sm:$0xff] %vm2637, 1.0
      %2670 = vrot.lane.b32.xlu0 %v1313, 5
      %v2671 = vpop.permute.xlu0 %2670
      %2672 = vrot.lane.b32.xlu0 %v1315, 5
      %v2673 = vpop.permute.xlu0 %2672
      %2674 = vrot.lane.b32.xlu0 %v1317, 5
      %v2675 = vpop.permute.xlu0 %2674
      %2676 = vrot.lane.b32.xlu0 %v1319, 5
      %v2677 = vpop.permute.xlu0 %2676
      %2678 = vrot.lane.b32.xlu0 %v1321, 5
      %v2679 = vpop.permute.xlu0 %2678
      %2680 = vrot.lane.b32.xlu0 %v1323, 5
      %v2681 = vpop.permute.xlu0 %2680
      %2682 = vrot.lane.b32.xlu0 %v1325, 5
      %v2683 = vpop.permute.xlu0 %2682
      %2684 = vrot.lane.b32.xlu0 %v1327, 5
      %v2685 = vpop.permute.xlu0 %2684
      %2686 = vrot.lane.b32.xlu0 %v1329, 5
      %v2687 = vpop.permute.xlu0 %2686
      %2688 = vrot.lane.b32.xlu0 %v1331, 5
      %v2689 = vpop.permute.xlu0 %2688
      %2690 = vrot.lane.b32.xlu0 %v1333, 5
      %v2691 = vpop.permute.xlu0 %2690
      %2692 = vrot.lane.b32.xlu0 %v1335, 5
      %v2693 = vpop.permute.xlu0 %2692
      %2694 = vrot.lane.b32.xlu0 %v1337, 5
      %v2695 = vpop.permute.xlu0 %2694
      %2696 = vrot.lane.b32.xlu0 %v1339, 5
      %v2697 = vpop.permute.xlu0 %2696
      %2698 = vrot.lane.b32.xlu0 %v1341, 5
      %v2699 = vpop.permute.xlu0 %2698
      %2700 = vrot.lane.b32.xlu0 %v1343, 5
      %v2701 = vpop.permute.xlu0 %2700
      %vm2718 = vcmask 171048
      %2719 = vst.msk [vmem:[%s341] sm:$0xff] %vm2718, %v2671
      %2720 = vst.msk [vmem:[%s341 + $0x8] sm:$0xff] %vm2718, %v2673
      %2721 = vst.msk [vmem:[%s341 + $0x10] sm:$0xff] %vm2718, %v2675
      %2722 = vst.msk [vmem:[%s341 + $0x18] sm:$0xff] %vm2718, %v2677
      %2723 = vst.msk [vmem:[%s341 + $0x20] sm:$0xff] %vm2718, %v2679
      %2724 = vst.msk [vmem:[%s341 + $0x28] sm:$0xff] %vm2718, %v2681
      %2725 = vst.msk [vmem:[%s341 + $0x30] sm:$0xff] %vm2718, %v2683
      %2726 = vst.msk [vmem:[%s341 + $0x38] sm:$0xff] %vm2718, %v2685
      %2727 = vst.msk [vmem:[%s341 + $0x40] sm:$0xff] %vm2718, %v2687
      %2728 = vst.msk [vmem:[%s341 + $0x48] sm:$0xff] %vm2718, %v2689
      %2729 = vst.msk [vmem:[%s341 + $0x50] sm:$0xff] %vm2718, %v2691
      %2730 = vst.msk [vmem:[%s341 + $0x58] sm:$0xff] %vm2718, %v2693
      %2731 = vst.msk [vmem:[%s341 + $0x60] sm:$0xff] %vm2718, %v2695
      %2732 = vst.msk [vmem:[%s341 + $0x68] sm:$0xff] %vm2718, %v2697
      %2733 = vst.msk [vmem:[%s341 + $0x70] sm:$0xff] %vm2718, %v2699
      %2734 = vst.msk [vmem:[%s341 + $0x78] sm:$0xff] %vm2718, %v2701
      %s2735 = smul.u32 16, %s27
      %p2736 = scmp.lt.s32.totalorder %s2735, 47
      %s2737 = scalar_select %p2736, %s2735, 47
      %s2738 = smul.addr %s2737, 8
      %s2739 = scalar_lea.vmem %s10, %s2738
      // Predicated region
      $region57: #{tpu_custom_call.1} parent=55 // pred_check
        %p2740 = pneg %p239
      $region58: #{tpu_custom_call.1} parent=55 // pred_check_branch
        %2742 = sbr.rel (%p2740) target = $region60
      $region59: #{tpu_custom_call.1} parent=55 // pred_region
        %s2743 = smul.u32 16, %s27
      $region60: #{tpu_custom_call.1} parent=55 // pred_fallthru
        _
    $region56: #{tpu_custom_call.1} parent=5 // pred_fallthru
      _
    %p2744 = scmp.le.s32.totalorder 2, %s22
    // Predicated region
    $region61: #{tpu_custom_call.1} parent=5 // pred_check
      %p2745 = pneg %p2744
    $region62: #{tpu_custom_call.1} parent=5 // pred_check_branch
      %2747 = sbr.rel (%p2745) target = $region64
    $region63: #{tpu_custom_call.1} parent=5 // pred_region
      %s2748 = ssub.s32 %s22, 2
      // Predicated region
      $region65: #{tpu_custom_call.1} parent=63 // pred_check
        %p2749 = pneg %p245
      $region66: #{tpu_custom_call.1} parent=63 // pred_check_branch
        %2751 = sbr.rel (%p2749) target = $region68
      $region67: #{tpu_custom_call.1} parent=63 // pred_region
        %s2752 = smul.u32 16, %s28
        %p2753 = scmp.lt.s32.totalorder %s2752, 47
        %s2754 = scalar_select %p2753, %s2752, 47
        %s2755 = smul.addr %s2754, 8
        %s2756 = scalar_lea.vmem %s10, %s2755
      $region68: #{tpu_custom_call.1} parent=63 // pred_fallthru
        _
    $region64: #{tpu_custom_call.1} parent=5 // pred_fallthru
      _
  $region6: #{tpu_custom_call.1} parent=0 // loop_footer
    %s26 = sadd.s32 1, %s22
  $region7: #{tpu_custom_call.1} parent=0 // loop_footer_branch
    %21 = sbr.rel target = $region3
  $region8: #{tpu_custom_call.1} parent=0 // loop_exit
    _

</llo_original>
